<compile_context>
chip_gen: v7x
topology: tpu7x:2x2x1
jax: 0.10.0
libtpu: 0.0.40
codegen_flags: <defaults>
</compile_context>

<pallas_src>
import functools

import numpy as np
import jax
import jax.numpy as jnp
from jax.experimental import pallas as pl
from jax.experimental.pallas import tpu as pltpu


# ----------------------------------------------------------------------------
# Pallas kernel: one batch tile of the whole forward pass
# ----------------------------------------------------------------------------
def _generator_kernel(x_ref,
                      w1_ref, b1_ref, g1_ref, be1_ref,
                      w2_ref, b2_ref, g2_ref, be2_ref,
                      w3_ref, b3_ref,
                      mask_ref,
                      out_ref, *, predict_noise):
    eps = jnp.float32(1e-5)
    x = x_ref[...]                                   # (tb, E), MXU operand dtype
    mxu_dtype = x.dtype

    def gn_relu(h, gamma, beta):
        # GroupNorm(num_groups=1): per-row normalization over the feature dim.
        mu = jnp.mean(h, axis=-1, keepdims=True)
        ms = jnp.mean(h * h, axis=-1, keepdims=True)
        var = jnp.maximum(ms - mu * mu, 0.0)         # guard fused-variance rounding
        hn = (h - mu) * jax.lax.rsqrt(var + eps)
        return jnp.maximum(hn * gamma + beta, 0.0)

    # Residual 1: Linear(E, G0) + GroupNorm + ReLU.
    z1 = jnp.dot(x, w1_ref[...], preferred_element_type=jnp.float32) + b1_ref[...]
    a1 = gn_relu(z1, g1_ref[...], be1_ref[...]).astype(mxu_dtype)

    # Residual 2: cat([a1, x]) @ W2 as ONE matmul over the lane-concatenated
    # activations (K = G0+E) -- no weight splitting, no separate x-matmul.
    h1x = jnp.concatenate([a1, x], axis=-1)          # (tb, G0+E) bf16
    z2 = jnp.dot(h1x, w2_ref[...], preferred_element_type=jnp.float32) + b2_ref[...]
    a2 = gn_relu(z2, g2_ref[...], be2_ref[...]).astype(mxu_dtype)

    # Final Linear: cat([a2, a1, x]) @ W3 as ONE matmul (K = G1+G0+E).
    # W3/b3 are zero-padded on the output dim to D_pad (lane-dense stores).
    h2h1x = jnp.concatenate([a2, h1x], axis=-1)      # (tb, G1+G0+E) bf16
    data = (jnp.dot(h2h1x, w3_ref[...], preferred_element_type=jnp.float32)
            + b3_ref[...])                            # (tb, D_pad) f32

    if predict_noise:
        out_ref[...] = data
        return

    # Masked / segmented softmax over the categorical groups, full-width pass.
    mask = mask_ref[...]                              # (G, D_pad), 0/1 f32
    mask_m = mask.astype(mxu_dtype)                   # exact (0/1) in bf16
    n_groups = mask.shape[0]
    is_cat = jnp.sum(mask, axis=0, keepdims=True)     # (1, D_pad)
    cat_sel = is_cat > 0                              # hoisted, reused below
    neg = jnp.float32(-1e30)

    # Per-group max: static full-width masked reduces stacked to (tb, G), then
    # broadcast back to member columns with one tiny mask matmul (MXU slot,
    # keeps the VPU free and drops a live (tb, D_pad) accumulator).
    gmaxs = jnp.concatenate(
        [jnp.max(jnp.where(mask[g:g + 1, :] > 0, data, neg), axis=-1, keepdims=True)
         for g in range(n_groups)], axis=-1)          # (tb, G)
    gmax_cols = jnp.dot(gmaxs.astype(mxu_dtype), mask_m,
                        preferred_element_type=jnp.float32)

    e = jnp.exp(jnp.where(cat_sel, data - gmax_cols, neg))   # 0 on non-cat cols
    # Per-group sums via two tiny mask matmuls: (tb,Dp)x(G,Dp)->(tb,G)->(tb,Dp)
    gsum = jax.lax.dot_general(e.astype(mxu_dtype), mask_m,
                               (((1,), (1,)), ((), ())),
                               preferred_element_type=jnp.float32)
    denom = jnp.dot(gsum.astype(mxu_dtype), mask_m,
                    preferred_element_type=jnp.float32)
    inv = pl.reciprocal(denom + (1.0 - is_cat), approx=True)   # EUP slot
    out_ref[...] = jnp.where(cat_sel, e * inv, data)           # numerics pass thru


# ----------------------------------------------------------------------------
# Wrapper
# ----------------------------------------------------------------------------
def _round_up(n, m):
    return ((n + m - 1) // m) * m


def mixed_type_generator(x, params, *, predict_noise, categorical_start_idx,
                         cat_counts, data_dim, tile_b=None,
                         mxu_dtype=jnp.bfloat16):
    """Pallas forward of MixedTypeGenerator.

    params = (w1, b1, g1, be1, w2, b2, g2, be2, w3, b3) with weights already
    transposed to (in_features, out_features); bias/gamma/beta are (1, features).
    """
    (w1, b1, g1, be1, w2, b2, g2, be2, w3, b3) = params
    B, E = x.shape
    G0, G1 = w1.shape[1], w2.shape[1]
    D = data_dim
    D_pad = _round_up(D, 128)                 # lane-dense output stores
    counts = tuple(cat_counts.values())
    n_groups = len(counts)

    if tile_b is None:
        # Two grid steps by default: uses both TensorCores on v7x, and the extra
        # fixed per-step cost vs. a single step is negligible on 1-TC chips.
        # (Kernel is overhead-bound; VMEM is nowhere near binding even at 2048.)
        tile_b = min(_round_up(max(pl.cdiv(B, 2), 8), 8), 1024)
    assert tile_b % 8 == 0, "tile_b must be a multiple of 8 sublanes"

    B_pad = _round_up(B, tile_b)
    if B_pad != B:
        x = jnp.pad(x, ((0, B_pad - B), (0, 0)))
    grid = (B_pad // tile_b,)

    def pad_out(a):                            # zero-pad output dim to D_pad
        return jnp.pad(a, ((0, 0), (0, D_pad - D)))

    w3p, b3p = pad_out(w3), pad_out(b3)

    # MXU operands in bf16 (f32 accumulation in-kernel); elementwise stays f32.
    cast = lambda a: a.astype(mxu_dtype)
    xm, w1m, w2m, w3m = cast(x), cast(w1), cast(w2), cast(w3p)

    # Static categorical-group membership mask, (n_groups, D_pad).
    mask_np = np.zeros((max(n_groups, 1), D_pad), np.float32)
    idx = categorical_start_idx
    for g, v in enumerate(counts):
        mask_np[g, idx:idx + v] = 1.0
        idx += v
    mask = jnp.asarray(mask_np)

    inputs = (xm,
              w1m, b1, g1, be1,
              w2m, b2, g2, be2,
              w3m, b3p,
              mask)

    # x / out are tiled over the batch; everything else stays VMEM-resident
    # (constant index_map). Resident params total ~0.1 MiB, so double-buffer
    # duplication is negligible; tile size is bounded by vreg pressure, not VMEM.
    resident = [pl.BlockSpec(a.shape, lambda i: (0, 0)) for a in inputs[1:]]
    in_specs = [pl.BlockSpec((tile_b, E), lambda i: (i, 0))] + resident
    out_specs = pl.BlockSpec((tile_b, D_pad), lambda i: (i, 0))

    flops = 2 * B_pad * (E * G0 + (E + G0) * G1 + (E + G0 + G1) * D_pad
                         + 3 * n_groups * D_pad)
    bytes_accessed = int(sum(int(np.prod(a.shape)) * a.dtype.itemsize
                             for a in inputs) + B_pad * D_pad * 4)
    transcendentals = 0 if predict_noise else B_pad * (D_pad + 2)

    kernel = functools.partial(_generator_kernel, predict_noise=predict_noise)
    out = pl.pallas_call(
        kernel,
        out_shape=jax.ShapeDtypeStruct((B_pad, D_pad), jnp.float32),
        grid=grid,
        in_specs=in_specs,
        out_specs=out_specs,
        compiler_params=pltpu.CompilerParams(
            dimension_semantics=("parallel",),        # 2 TensorCores on v7x
            vmem_limit_bytes=32 * 1024 * 1024),       # safe on v5e/v6e/v7x
        cost_estimate=pl.CostEstimate(flops=flops,
                                      transcendentals=transcendentals,
                                      bytes_accessed=bytes_accessed),
    )(*inputs)
    return out[:B, :D]


# ----------------------------------------------------------------------------
# Pure-JAX reference (mirrors the PyTorch forward; same bf16 MXU-operand
# casting as the kernel so the comparison isolates kernel structure, with f32
# accumulation and f32 elementwise math).
# ----------------------------------------------------------------------------
def reference_forward(x, params, *, predict_noise, categorical_start_idx,
                      cat_counts, mxu_dtype=jnp.bfloat16):
    (w1, b1, g1, be1, w2, b2, g2, be2, w3, b3) = params
    eps = 1e-5

    def mm(a, w):
        return jnp.dot(a.astype(mxu_dtype), w.astype(mxu_dtype),
                       preferred_element_type=jnp.float32)

    def residual(inp, w, b, gamma, beta):
        h = mm(inp, w) + b
        mu = jnp.mean(h, axis=-1, keepdims=True)
        var = jnp.mean((h - mu) ** 2, axis=-1, keepdims=True)
        hn = (h - mu) / jnp.sqrt(var + eps) * gamma + beta
        hn = jnp.maximum(hn, 0.0)
        return jnp.concatenate([hn, inp], axis=1)

    h1 = residual(x, w1, b1, g1, be1)
    h2 = residual(h1, w2, b2, g2, be2)
    data = mm(h2, w3) + b3
    if predict_noise:
        return data
    pieces = [data[:, :categorical_start_idx]]
    idx = categorical_start_idx
    for v in cat_counts.values():
        pieces.append(jax.nn.softmax(data[:, idx:idx + v], axis=-1))
        idx += v
    return jnp.concatenate(pieces, axis=1)


# ----------------------------------------------------------------------------
# Main
# ----------------------------------------------------------------------------
if __name__ == "__main__":
    B = 256                     # batch (-> 2 grid steps of 128 rows)
    E = 32                      # embedding_dim
    G0, G1 = 64, 64             # gen_dims
    CAT_START = 8               # categorical_start_idx (numerical width)
    CAT_COUNTS = {"a": 4, "b": 4, "c": 8}
    D = CAT_START + sum(CAT_COUNTS.values())   # data_dim = 24

    key = jax.random.PRNGKey(0)
    ks = jax.random.split(key, 8)

    def lin(kw, kb, fan_in, fan_out):
        bound = 1.0 / float(np.sqrt(fan_in))
        w = jax.random.uniform(kw, (fan_in, fan_out), jnp.float32, -bound, bound)
        b = jax.random.uniform(kb, (1, fan_out), jnp.float32, -bound, bound)
        return w, b

    # Residual 1: Linear(E, G0) + GroupNorm(1, G0)
    w1, b1 = lin(ks[0], ks[1], E, G0)
    g1 = jnp.ones((1, G0), jnp.float32)
    be1 = jnp.zeros((1, G0), jnp.float32)
    # Residual 2: Linear(E+G0, G1) + GroupNorm(1, G1)
    w2, b2 = lin(ks[2], ks[3], E + G0, G1)
    g2 = jnp.ones((1, G1), jnp.float32)
    be2 = jnp.zeros((1, G1), jnp.float32)
    # Final Linear(E+G0+G1, D)
    w3, b3 = lin(ks[4], ks[5], E + G0 + G1, D)
    params = (w1, b1, g1, be1, w2, b2, g2, be2, w3, b3)

    x = jax.random.normal(ks[6], (B, E), jnp.float32)

    for predict_noise in (False, True):          # softmax path + raw-noise path
        out = mixed_type_generator(
            x, params,
            predict_noise=predict_noise,
            categorical_start_idx=CAT_START,
            cat_counts=CAT_COUNTS,
            data_dim=D,
        )
        out = jax.block_until_ready(out)
        ref = reference_forward(
            x, params,
            predict_noise=predict_noise,
            categorical_start_idx=CAT_START,
            cat_counts=CAT_COUNTS,
        )
        assert out.shape == (B, D)
        assert jnp.allclose(out, ref, atol=1e-2, rtol=1e-2), \
            f"mismatch vs reference (predict_noise={predict_noise})"

    print("KERNEL_OK")
</pallas_src>

<mosaic_0001>
module attributes {stable_mosaic.version = 11 : i64} {
  func.func @_generator_kernel(%arg0: i32, %arg1: memref<128x32xbf16, #tpu.memory_space<vmem>>, %arg2: memref<32x64xbf16, #tpu.memory_space<vmem>>, %arg3: memref<1x64xf32, #tpu.memory_space<vmem>>, %arg4: memref<1x64xf32, #tpu.memory_space<vmem>>, %arg5: memref<1x64xf32, #tpu.memory_space<vmem>>, %arg6: memref<96x64xbf16, #tpu.memory_space<vmem>>, %arg7: memref<1x64xf32, #tpu.memory_space<vmem>>, %arg8: memref<1x64xf32, #tpu.memory_space<vmem>>, %arg9: memref<1x64xf32, #tpu.memory_space<vmem>>, %arg10: memref<160x128xbf16, #tpu.memory_space<vmem>>, %arg11: memref<1x128xf32, #tpu.memory_space<vmem>>, %arg12: memref<3x128xf32, #tpu.memory_space<vmem>>, %arg13: memref<128x128xf32, #tpu.memory_space<vmem>>) attributes {dimension_semantics = [#tpu.dimension_semantics<parallel>], iteration_bounds = array<i64: 2>, scalar_prefetch = 0 : i64, scratch_operands = 0 : i64, tpu.core_type = #tpu.core_type<tc>, window_params = [{transform_indices = @transform_0, window_bounds = array<i64: 128, 32>}, {pipeline_mode = #tpu.pipeline_mode<synchronous>, transform_indices = @transform_1, window_bounds = array<i64: 32, 64>}, {pipeline_mode = #tpu.pipeline_mode<synchronous>, transform_indices = @transform_2, window_bounds = array<i64: 1, 64>}, {pipeline_mode = #tpu.pipeline_mode<synchronous>, transform_indices = @transform_3, window_bounds = array<i64: 1, 64>}, {pipeline_mode = #tpu.pipeline_mode<synchronous>, transform_indices = @transform_4, window_bounds = array<i64: 1, 64>}, {pipeline_mode = #tpu.pipeline_mode<synchronous>, transform_indices = @transform_5, window_bounds = array<i64: 96, 64>}, {pipeline_mode = #tpu.pipeline_mode<synchronous>, transform_indices = @transform_6, window_bounds = array<i64: 1, 64>}, {pipeline_mode = #tpu.pipeline_mode<synchronous>, transform_indices = @transform_7, window_bounds = array<i64: 1, 64>}, {pipeline_mode = #tpu.pipeline_mode<synchronous>, transform_indices = @transform_8, window_bounds = array<i64: 1, 64>}, {pipeline_mode = #tpu.pipeline_mode<synchronous>, transform_indices = @transform_9, window_bounds = array<i64: 160, 128>}, {pipeline_mode = #tpu.pipeline_mode<synchronous>, transform_indices = @transform_10, window_bounds = array<i64: 1, 128>}, {pipeline_mode = #tpu.pipeline_mode<synchronous>, transform_indices = @transform_11, window_bounds = array<i64: 3, 128>}, {transform_indices = @transform_12, window_bounds = array<i64: 128, 128>}]} {
    %c0 = arith.constant 0 : index
    %c0_0 = arith.constant 0 : index
    %0 = vector.load %arg1[%c0, %c0_0] : memref<128x32xbf16, #tpu.memory_space<vmem>>, vector<128x32xbf16>
    %c0_1 = arith.constant 0 : index
    %c0_2 = arith.constant 0 : index
    %1 = vector.load %arg2[%c0_1, %c0_2] : memref<32x64xbf16, #tpu.memory_space<vmem>>, vector<32x64xbf16>
    %cst = arith.constant dense<0.000000e+00> : vector<128x64xf32>
    %2 = tpu.matmul %0, %1, %cst {dimension_numbers = #tpu.dot_dimension_numbers<[1], [0], [0], [1], [0, 0, 1, 1], [], []>} : vector<128x32xbf16>, vector<32x64xbf16>, vector<128x64xf32> -> vector<128x64xf32>
    %c0_3 = arith.constant 0 : index
    %c0_4 = arith.constant 0 : index
    %3 = vector.load %arg3[%c0_3, %c0_4] : memref<1x64xf32, #tpu.memory_space<vmem>>, vector<1x64xf32>
    %4 = vector.broadcast %3 : vector<1x64xf32> to vector<128x64xf32>
    %5 = arith.addf %2, %4 : vector<128x64xf32>
    %c0_5 = arith.constant 0 : index
    %c0_6 = arith.constant 0 : index
    %6 = vector.load %arg4[%c0_5, %c0_6] : memref<1x64xf32, #tpu.memory_space<vmem>>, vector<1x64xf32>
    %c0_7 = arith.constant 0 : index
    %c0_8 = arith.constant 0 : index
    %7 = vector.load %arg5[%c0_7, %c0_8] : memref<1x64xf32, #tpu.memory_space<vmem>>, vector<1x64xf32>
    %cst_9 = arith.constant dense<0.000000e+00> : vector<128xf32>
    %8 = vector.multi_reduction <add>, %5, %cst_9 [1] : vector<128x64xf32> to vector<128xf32>
    %9 = vector.shape_cast %8 : vector<128xf32> to vector<128x1xf32>
    %cst_10 = arith.constant 6.400000e+01 : f32
    %10 = vector.broadcast %cst_10 : f32 to vector<128x1xf32>
    %11 = arith.divf %9, %10 : vector<128x1xf32>
    %12 = arith.mulf %5, %5 : vector<128x64xf32>
    %cst_11 = arith.constant dense<0.000000e+00> : vector<128xf32>
    %13 = vector.multi_reduction <add>, %12, %cst_11 [1] : vector<128x64xf32> to vector<128xf32>
    %14 = vector.shape_cast %13 : vector<128xf32> to vector<128x1xf32>
    %cst_12 = arith.constant 6.400000e+01 : f32
    %15 = vector.broadcast %cst_12 : f32 to vector<128x1xf32>
    %16 = arith.divf %14, %15 : vector<128x1xf32>
    %17 = arith.mulf %11, %11 : vector<128x1xf32>
    %18 = arith.subf %16, %17 : vector<128x1xf32>
    %cst_13 = arith.constant 0.000000e+00 : f32
    %19 = vector.broadcast %cst_13 : f32 to vector<128x1xf32>
    %20 = arith.maximumf %18, %19 : vector<128x1xf32>
    %21 = vector.broadcast %11 : vector<128x1xf32> to vector<128x64xf32>
    %22 = arith.subf %5, %21 : vector<128x64xf32>
    %cst_14 = arith.constant 9.99999974E-6 : f32
    %23 = vector.broadcast %cst_14 : f32 to vector<128x1xf32>
    %24 = arith.addf %20, %23 : vector<128x1xf32>
    %25 = math.rsqrt %24 : vector<128x1xf32>
    %26 = vector.broadcast %25 : vector<128x1xf32> to vector<128x64xf32>
    %27 = arith.mulf %22, %26 : vector<128x64xf32>
    %28 = vector.broadcast %6 : vector<1x64xf32> to vector<128x64xf32>
    %29 = arith.mulf %27, %28 : vector<128x64xf32>
    %30 = vector.broadcast %7 : vector<1x64xf32> to vector<128x64xf32>
    %31 = arith.addf %29, %30 : vector<128x64xf32>
    %cst_15 = arith.constant 0.000000e+00 : f32
    %32 = vector.broadcast %cst_15 : f32 to vector<128x64xf32>
    %33 = arith.maximumf %31, %32 : vector<128x64xf32>
    %34 = arith.truncf %33 : vector<128x64xf32> to vector<128x64xbf16>
    %35 = tpu.concatenate %34, %0 in 1 : vector<128x64xbf16>, vector<128x32xbf16> -> vector<128x96xbf16>
    %c0_16 = arith.constant 0 : index
    %c0_17 = arith.constant 0 : index
    %36 = vector.load %arg6[%c0_16, %c0_17] : memref<96x64xbf16, #tpu.memory_space<vmem>>, vector<96x64xbf16>
    %cst_18 = arith.constant dense<0.000000e+00> : vector<128x64xf32>
    %37 = tpu.matmul %35, %36, %cst_18 {dimension_numbers = #tpu.dot_dimension_numbers<[1], [0], [0], [1], [0, 0, 1, 1], [], []>} : vector<128x96xbf16>, vector<96x64xbf16>, vector<128x64xf32> -> vector<128x64xf32>
    %c0_19 = arith.constant 0 : index
    %c0_20 = arith.constant 0 : index
    %38 = vector.load %arg7[%c0_19, %c0_20] : memref<1x64xf32, #tpu.memory_space<vmem>>, vector<1x64xf32>
    %39 = vector.broadcast %38 : vector<1x64xf32> to vector<128x64xf32>
    %40 = arith.addf %37, %39 : vector<128x64xf32>
    %c0_21 = arith.constant 0 : index
    %c0_22 = arith.constant 0 : index
    %41 = vector.load %arg8[%c0_21, %c0_22] : memref<1x64xf32, #tpu.memory_space<vmem>>, vector<1x64xf32>
    %c0_23 = arith.constant 0 : index
    %c0_24 = arith.constant 0 : index
    %42 = vector.load %arg9[%c0_23, %c0_24] : memref<1x64xf32, #tpu.memory_space<vmem>>, vector<1x64xf32>
    %cst_25 = arith.constant dense<0.000000e+00> : vector<128xf32>
    %43 = vector.multi_reduction <add>, %40, %cst_25 [1] : vector<128x64xf32> to vector<128xf32>
    %44 = vector.shape_cast %43 : vector<128xf32> to vector<128x1xf32>
    %cst_26 = arith.constant 6.400000e+01 : f32
    %45 = vector.broadcast %cst_26 : f32 to vector<128x1xf32>
    %46 = arith.divf %44, %45 : vector<128x1xf32>
    %47 = arith.mulf %40, %40 : vector<128x64xf32>
    %cst_27 = arith.constant dense<0.000000e+00> : vector<128xf32>
    %48 = vector.multi_reduction <add>, %47, %cst_27 [1] : vector<128x64xf32> to vector<128xf32>
    %49 = vector.shape_cast %48 : vector<128xf32> to vector<128x1xf32>
    %cst_28 = arith.constant 6.400000e+01 : f32
    %50 = vector.broadcast %cst_28 : f32 to vector<128x1xf32>
    %51 = arith.divf %49, %50 : vector<128x1xf32>
    %52 = arith.mulf %46, %46 : vector<128x1xf32>
    %53 = arith.subf %51, %52 : vector<128x1xf32>
    %cst_29 = arith.constant 0.000000e+00 : f32
    %54 = vector.broadcast %cst_29 : f32 to vector<128x1xf32>
    %55 = arith.maximumf %53, %54 : vector<128x1xf32>
    %56 = vector.broadcast %46 : vector<128x1xf32> to vector<128x64xf32>
    %57 = arith.subf %40, %56 : vector<128x64xf32>
    %cst_30 = arith.constant 9.99999974E-6 : f32
    %58 = vector.broadcast %cst_30 : f32 to vector<128x1xf32>
    %59 = arith.addf %55, %58 : vector<128x1xf32>
    %60 = math.rsqrt %59 : vector<128x1xf32>
    %61 = vector.broadcast %60 : vector<128x1xf32> to vector<128x64xf32>
    %62 = arith.mulf %57, %61 : vector<128x64xf32>
    %63 = vector.broadcast %41 : vector<1x64xf32> to vector<128x64xf32>
    %64 = arith.mulf %62, %63 : vector<128x64xf32>
    %65 = vector.broadcast %42 : vector<1x64xf32> to vector<128x64xf32>
    %66 = arith.addf %64, %65 : vector<128x64xf32>
    %cst_31 = arith.constant 0.000000e+00 : f32
    %67 = vector.broadcast %cst_31 : f32 to vector<128x64xf32>
    %68 = arith.maximumf %66, %67 : vector<128x64xf32>
    %69 = arith.truncf %68 : vector<128x64xf32> to vector<128x64xbf16>
    %70 = tpu.concatenate %69, %35 in 1 : vector<128x64xbf16>, vector<128x96xbf16> -> vector<128x160xbf16>
    %c0_32 = arith.constant 0 : index
    %c0_33 = arith.constant 0 : index
    %71 = vector.load %arg10[%c0_32, %c0_33] : memref<160x128xbf16, #tpu.memory_space<vmem>>, vector<160x128xbf16>
    %cst_34 = arith.constant dense<0.000000e+00> : vector<128x128xf32>
    %72 = tpu.matmul %70, %71, %cst_34 {dimension_numbers = #tpu.dot_dimension_numbers<[1], [0], [0], [1], [0, 0, 1, 1], [], []>} : vector<128x160xbf16>, vector<160x128xbf16>, vector<128x128xf32> -> vector<128x128xf32>
    %c0_35 = arith.constant 0 : index
    %c0_36 = arith.constant 0 : index
    %73 = vector.load %arg11[%c0_35, %c0_36] : memref<1x128xf32, #tpu.memory_space<vmem>>, vector<1x128xf32>
    %74 = vector.broadcast %73 : vector<1x128xf32> to vector<128x128xf32>
    %75 = arith.addf %72, %74 : vector<128x128xf32>
    %c0_37 = arith.constant 0 : index
    %c0_38 = arith.constant 0 : index
    %76 = vector.load %arg12[%c0_37, %c0_38] : memref<3x128xf32, #tpu.memory_space<vmem>>, vector<3x128xf32>
    %77 = arith.truncf %76 : vector<3x128xf32> to vector<3x128xbf16>
    %cst_39 = arith.constant dense<0.000000e+00> : vector<128xf32>
    %78 = vector.multi_reduction <add>, %76, %cst_39 [0] : vector<3x128xf32> to vector<128xf32>
    %79 = vector.shape_cast %78 : vector<128xf32> to vector<1x128xf32>
    %cst_40 = arith.constant 0.000000e+00 : f32
    %80 = vector.broadcast %cst_40 : f32 to vector<1x128xf32>
    %81 = arith.cmpf ogt, %79, %80 : vector<1x128xf32>
    %82 = vector.extract_strided_slice %76 {offsets = [0, 0], sizes = [1, 128], strides = [1, 1]} : vector<3x128xf32> to vector<1x128xf32>
    %cst_41 = arith.constant 0.000000e+00 : f32
    %83 = vector.broadcast %cst_41 : f32 to vector<1x128xf32>
    %84 = arith.cmpf ogt, %82, %83 : vector<1x128xf32>
    %cst_42 = arith.constant -1.000000e+30 : f32
    %85 = vector.shape_cast %84 : vector<1x128xi1> to vector<1x128xi1>
    %86 = vector.broadcast %85 : vector<1x128xi1> to vector<128x128xi1>
    %87 = vector.broadcast %cst_42 : f32 to vector<128x128xf32>
    %88 = arith.select %86, %75, %87 : vector<128x128xi1>, vector<128x128xf32>
    %cst_43 = arith.constant dense<0xFF800000> : vector<128xf32>
    %89 = vector.multi_reduction <maximumf>, %88, %cst_43 [1] : vector<128x128xf32> to vector<128xf32>
    %90 = vector.shape_cast %89 : vector<128xf32> to vector<128x1xf32>
    %91 = vector.extract_strided_slice %76 {offsets = [1, 0], sizes = [1, 128], strides = [1, 1]} : vector<3x128xf32> to vector<1x128xf32>
    %cst_44 = arith.constant 0.000000e+00 : f32
    %92 = vector.broadcast %cst_44 : f32 to vector<1x128xf32>
    %93 = arith.cmpf ogt, %91, %92 : vector<1x128xf32>
    %cst_45 = arith.constant -1.000000e+30 : f32
    %94 = vector.shape_cast %93 : vector<1x128xi1> to vector<1x128xi1>
    %95 = vector.broadcast %94 : vector<1x128xi1> to vector<128x128xi1>
    %96 = vector.broadcast %cst_45 : f32 to vector<128x128xf32>
    %97 = arith.select %95, %75, %96 : vector<128x128xi1>, vector<128x128xf32>
    %cst_46 = arith.constant dense<0xFF800000> : vector<128xf32>
    %98 = vector.multi_reduction <maximumf>, %97, %cst_46 [1] : vector<128x128xf32> to vector<128xf32>
    %99 = vector.shape_cast %98 : vector<128xf32> to vector<128x1xf32>
    %100 = vector.extract_strided_slice %76 {offsets = [2, 0], sizes = [1, 128], strides = [1, 1]} : vector<3x128xf32> to vector<1x128xf32>
    %cst_47 = arith.constant 0.000000e+00 : f32
    %101 = vector.broadcast %cst_47 : f32 to vector<1x128xf32>
    %102 = arith.cmpf ogt, %100, %101 : vector<1x128xf32>
    %cst_48 = arith.constant -1.000000e+30 : f32
    %103 = vector.shape_cast %102 : vector<1x128xi1> to vector<1x128xi1>
    %104 = vector.broadcast %103 : vector<1x128xi1> to vector<128x128xi1>
    %105 = vector.broadcast %cst_48 : f32 to vector<128x128xf32>
    %106 = arith.select %104, %75, %105 : vector<128x128xi1>, vector<128x128xf32>
    %cst_49 = arith.constant dense<0xFF800000> : vector<128xf32>
    %107 = vector.multi_reduction <maximumf>, %106, %cst_49 [1] : vector<128x128xf32> to vector<128xf32>
    %108 = vector.shape_cast %107 : vector<128xf32> to vector<128x1xf32>
    %109 = tpu.concatenate %90, %99, %108 in 1 : vector<128x1xf32>, vector<128x1xf32>, vector<128x1xf32> -> vector<128x3xf32>
    %110 = arith.truncf %109 : vector<128x3xf32> to vector<128x3xbf16>
    %cst_50 = arith.constant dense<0.000000e+00> : vector<128x128xf32>
    %111 = tpu.matmul %110, %77, %cst_50 {dimension_numbers = #tpu.dot_dimension_numbers<[1], [0], [0], [1], [0, 0, 1, 1], [], []>} : vector<128x3xbf16>, vector<3x128xbf16>, vector<128x128xf32> -> vector<128x128xf32>
    %112 = arith.subf %75, %111 : vector<128x128xf32>
    %cst_51 = arith.constant -1.000000e+30 : f32
    %113 = vector.shape_cast %81 : vector<1x128xi1> to vector<1x128xi1>
    %114 = vector.broadcast %113 : vector<1x128xi1> to vector<128x128xi1>
    %115 = vector.broadcast %cst_51 : f32 to vector<128x128xf32>
    %116 = arith.select %114, %112, %115 : vector<128x128xi1>, vector<128x128xf32>
    %117 = math.exp %116 : vector<128x128xf32>
    %118 = arith.truncf %117 : vector<128x128xf32> to vector<128x128xbf16>
    %cst_52 = arith.constant dense<0.000000e+00> : vector<128x3xf32>
    %119 = tpu.matmul %118, %77, %cst_52 {dimension_numbers = #tpu.dot_dimension_numbers<[1], [1], [0], [0], [0, 0, 1, 0], [], []>} : vector<128x128xbf16>, vector<3x128xbf16>, vector<128x3xf32> -> vector<128x3xf32>
    %120 = arith.truncf %119 : vector<128x3xf32> to vector<128x3xbf16>
    %cst_53 = arith.constant dense<0.000000e+00> : vector<128x128xf32>
    %121 = tpu.matmul %120, %77, %cst_53 {dimension_numbers = #tpu.dot_dimension_numbers<[1], [0], [0], [1], [0, 0, 1, 1], [], []>} : vector<128x3xbf16>, vector<3x128xbf16>, vector<128x128xf32> -> vector<128x128xf32>
    %cst_54 = arith.constant 1.000000e+00 : f32
    %122 = vector.broadcast %cst_54 : f32 to vector<1x128xf32>
    %123 = arith.subf %122, %79 : vector<1x128xf32>
    %124 = vector.broadcast %123 : vector<1x128xf32> to vector<128x128xf32>
    %125 = arith.addf %121, %124 : vector<128x128xf32>
    %126 = tpu.reciprocal %125 {approx = true} : vector<128x128xf32> -> vector<128x128xf32>
    %127 = arith.mulf %117, %126 : vector<128x128xf32>
    %128 = vector.shape_cast %81 : vector<1x128xi1> to vector<1x128xi1>
    %129 = vector.broadcast %128 : vector<1x128xi1> to vector<128x128xi1>
    %130 = arith.select %129, %127, %75 : vector<128x128xi1>, vector<128x128xf32>
    %c0_55 = arith.constant 0 : index
    %c0_56 = arith.constant 0 : index
    %131 = vector.load %arg13[%c0_55, %c0_56] : memref<128x128xf32, #tpu.memory_space<vmem>>, vector<128x128xf32>
    tpu.vector_store %arg13[%c0_55, %c0_56], %130 {strides = array<i32>} : memref<128x128xf32, #tpu.memory_space<vmem>>, vector<128x128xf32>,
    return
  }
  func.func @transform_0(%arg0: i32) -> (i32, i32) {
    %c0_i32 = arith.constant 0 : i32
    %c0_i32_0 = arith.constant 0 : i32
    return %arg0, %c0_i32 : i32, i32
  }
  func.func @transform_1(%arg0: i32) -> (i32, i32) {
    %c0_i32 = arith.constant 0 : i32
    %c0_i32_0 = arith.constant 0 : i32
    %c0_i32_1 = arith.constant 0 : i32
    return %c0_i32, %c0_i32_0 : i32, i32
  }
  func.func @transform_2(%arg0: i32) -> (i32, i32) {
    %c0_i32 = arith.constant 0 : i32
    %c0_i32_0 = arith.constant 0 : i32
    %c0_i32_1 = arith.constant 0 : i32
    return %c0_i32, %c0_i32_0 : i32, i32
  }
  func.func @transform_3(%arg0: i32) -> (i32, i32) {
    %c0_i32 = arith.constant 0 : i32
    %c0_i32_0 = arith.constant 0 : i32
    %c0_i32_1 = arith.constant 0 : i32
    return %c0_i32, %c0_i32_0 : i32, i32
  }
  func.func @transform_4(%arg0: i32) -> (i32, i32) {
    %c0_i32 = arith.constant 0 : i32
    %c0_i32_0 = arith.constant 0 : i32
    %c0_i32_1 = arith.constant 0 : i32
    return %c0_i32, %c0_i32_0 : i32, i32
  }
  func.func @transform_5(%arg0: i32) -> (i32, i32) {
    %c0_i32 = arith.constant 0 : i32
    %c0_i32_0 = arith.constant 0 : i32
    %c0_i32_1 = arith.constant 0 : i32
    return %c0_i32, %c0_i32_0 : i32, i32
  }
  func.func @transform_6(%arg0: i32) -> (i32, i32) {
    %c0_i32 = arith.constant 0 : i32
    %c0_i32_0 = arith.constant 0 : i32
    %c0_i32_1 = arith.constant 0 : i32
    return %c0_i32, %c0_i32_0 : i32, i32
  }
  func.func @transform_7(%arg0: i32) -> (i32, i32) {
    %c0_i32 = arith.constant 0 : i32
    %c0_i32_0 = arith.constant 0 : i32
    %c0_i32_1 = arith.constant 0 : i32
    return %c0_i32, %c0_i32_0 : i32, i32
  }
  func.func @transform_8(%arg0: i32) -> (i32, i32) {
    %c0_i32 = arith.constant 0 : i32
    %c0_i32_0 = arith.constant 0 : i32
    %c0_i32_1 = arith.constant 0 : i32
    return %c0_i32, %c0_i32_0 : i32, i32
  }
  func.func @transform_9(%arg0: i32) -> (i32, i32) {
    %c0_i32 = arith.constant 0 : i32
    %c0_i32_0 = arith.constant 0 : i32
    %c0_i32_1 = arith.constant 0 : i32
    return %c0_i32, %c0_i32_0 : i32, i32
  }
  func.func @transform_10(%arg0: i32) -> (i32, i32) {
    %c0_i32 = arith.constant 0 : i32
    %c0_i32_0 = arith.constant 0 : i32
    %c0_i32_1 = arith.constant 0 : i32
    return %c0_i32, %c0_i32_0 : i32, i32
  }
  func.func @transform_11(%arg0: i32) -> (i32, i32) {
    %c0_i32 = arith.constant 0 : i32
    %c0_i32_0 = arith.constant 0 : i32
    %c0_i32_1 = arith.constant 0 : i32
    return %c0_i32, %c0_i32_0 : i32, i32
  }
  func.func @transform_12(%arg0: i32) -> (i32, i32) {
    %c0_i32 = arith.constant 0 : i32
    %c0_i32_0 = arith.constant 0 : i32
    return %arg0, %c0_i32 : i32, i32
  }
}

</mosaic_0001>

<llo_original>
// kernel: tpu_custom_call.1
$region0: #{tpu_custom_call.1}
  #allocation0 [shape = 'u32[]', space=smem, size = 0x4, offset = 0x4, fixed_abs, tag = 'smem constant byte address 0x4 - core index']
  #allocation1 [shape = 'u32[144,128]{1,0:T(1,128)}', space=vmem, size = 0x12000, scoped, tag = 'internal scratch']
  %s0 = inlined_call_operand.vmem [shape: bf16[256,32], index: 0, kind: input, shape index: {}]
  %s1 = inlined_call_operand.vmem [shape: bf16[32,64], index: 1, kind: input, shape index: {}]
  %s2 = inlined_call_operand.vmem [shape: f32[1,64], index: 2, kind: input, shape index: {}]
  %s3 = inlined_call_operand.vmem [shape: f32[1,64], index: 3, kind: input, shape index: {}]
  %s4 = inlined_call_operand.vmem [shape: f32[1,64], index: 4, kind: input, shape index: {}]
  %s5 = inlined_call_operand.vmem [shape: bf16[96,64], index: 5, kind: input, shape index: {}]
  %s6 = inlined_call_operand.vmem [shape: f32[1,64], index: 6, kind: input, shape index: {}]
  %s7 = inlined_call_operand.vmem [shape: f32[1,64], index: 7, kind: input, shape index: {}]
  %s8 = inlined_call_operand.vmem [shape: f32[1,64], index: 8, kind: input, shape index: {}]
  %s9 = inlined_call_operand.vmem [shape: bf16[160,128], index: 9, kind: input, shape index: {}]
  %s10 = inlined_call_operand.vmem [shape: f32[1,128], index: 10, kind: input, shape index: {}]
  %s11 = inlined_call_operand.vmem [shape: f32[3,128], index: 11, kind: input, shape index: {}]
  %s12 = inlined_call_operand.hbm [shape: f32[256,128], index: 12, kind: output, shape index: {}]
  %s13 = sld [smem:[#allocation0]]
  $region81: #{tpu_custom_call.1} parent=0
    _
  %s15 = ssub.s32 1, %s13
  %s16 = scalar_select 0, %s15, %s13
  $region1: #{tpu_custom_call.1} parent=0
    #allocation2 [shape = 'u8[131072]{0}', space=vmem, size = 0x20000, scoped, tag = 'output window, operand 0']
    #allocation3 [shape = 's32[2]{0}', space=sflag, size = 0x8, scoped, tag = 'scoped memory for tpu_custom_call.1']
    %17 = vsyncpa [#allocation3], 0
    %s18 = scalar_lea.sflag [#allocation3], 1
    %19 = vsyncpa %s18, 0
    loop: start=0, step=1, limit=4
    $region2: #{tpu_custom_call.1} parent=1 // loop_pre_header
      _
    $region3: #{tpu_custom_call.1} parent=1 // loop_header
      %s21 = sphi 0, %s25
      %p22 = scmp.ge.s32.totalorder %s21, 4
      %s31 = sphi 0, %s33
      %s34 = sphi 0, %s31
      %s35 = sphi 0, %s34
      %s51 = sphi 0, %s35
      %s55 = sphi 0, %s55
      %s57 = sphi 0, %s55
      %s58 = sphi 0, %s57
      %s72 = sphi 0, %s58
      %s76 = sphi 0, %s76
      %s78 = sphi 0, %s76
      %s79 = sphi 0, %s78
      %s93 = sphi 0, %s79
      %s97 = sphi 0, %s97
      %s99 = sphi 0, %s97
      %s100 = sphi 0, %s99
      %s114 = sphi 0, %s100
      %s118 = sphi 0, %s118
      %s120 = sphi 0, %s118
      %s121 = sphi 0, %s120
      %s135 = sphi 0, %s121
      %s139 = sphi 0, %s139
      %s141 = sphi 0, %s139
      %s142 = sphi 0, %s141
      %s156 = sphi 0, %s142
      %s160 = sphi 0, %s160
      %s162 = sphi 0, %s160
      %s163 = sphi 0, %s162
      %s177 = sphi 0, %s163
      %s181 = sphi 0, %s181
      %s183 = sphi 0, %s181
      %s184 = sphi 0, %s183
      %s198 = sphi 0, %s184
      %s202 = sphi 0, %s202
      %s204 = sphi 0, %s202
      %s205 = sphi 0, %s204
      %s219 = sphi 0, %s205
      %s223 = sphi 0, %s223
      %s225 = sphi 0, %s223
      %s226 = sphi 0, %s225
      %s240 = sphi 0, %s226
      %s244 = sphi 0, %s244
      %s246 = sphi 0, %s244
      %s247 = sphi 0, %s246
      %s261 = sphi 0, %s247
      %s265 = sphi 0, %s265
      %s267 = sphi 0, %s265
      %s268 = sphi 0, %s267
      %s282 = sphi 0, %s268
      %s288 = sphi 0, %s290
      %s291 = sphi 0, %s288
      %s292 = sphi 0, %s291
      %s308 = sphi 0, %s292
    $region4: #{tpu_custom_call.1} parent=1 // loop_header_branch
      %24 = sbr.rel (%p22) target = $region8
    $region5: #{tpu_custom_call.1} parent=1 // loop_body
      %s26 = ssub.s32 %s21, 1
      %s27 = ssub.s32 %s21, 2
      %s28 = sadd.s32 %s21, 1
      %s29 = ssub.s32 %s21, %s28
      %p30 = scmp.eq.s32.totalorder %s29, 0
      %s32 = sadd.s32 %s31, 1
      %s33 = scalar_select %p30, %s31, %s32
      %p36 = pneg %p30
      %p37 = scmp.eq.s32.totalorder %s21, 1
      %p38 = por %p36, %p37
      %p39 = scmp.ne.s32.totalorder %s31, %s34
      %p40 = scmp.eq.s32.totalorder %s21, 0
      %p41 = por %p39, %p40
      %p42 = scmp.ne.s32.totalorder %s31, %s34
      %p43 = scmp.eq.s32.totalorder %s26, 1
      %p44 = por %p42, %p43
      %p45 = scmp.ne.s32.totalorder %s34, %s35
      %p46 = scmp.eq.s32.totalorder %s26, 0
      %p47 = por %p45, %p46
      %p48 = scmp.ne.s32.totalorder %s34, %s35
      %p49 = scmp.eq.s32.totalorder %s27, 1
      %p50 = por %p48, %p49
      %p52 = scmp.ne.s32.totalorder %s35, %s51
      %p53 = scmp.eq.s32.totalorder %s27, 0
      %p54 = por %p52, %p53
      %s56 = sadd.s32 %s55, 1
      %p59 = scmp.eq.s32.totalorder %s21, 1
      %p60 = scmp.ne.s32.totalorder %s55, %s57
      %p61 = scmp.eq.s32.totalorder %s21, 0
      %p62 = por %p60, %p61
      %p63 = scmp.ne.s32.totalorder %s55, %s57
      %p64 = scmp.eq.s32.totalorder %s26, 1
      %p65 = por %p63, %p64
      %p66 = scmp.ne.s32.totalorder %s57, %s58
      %p67 = scmp.eq.s32.totalorder %s26, 0
      %p68 = por %p66, %p67
      %p69 = scmp.ne.s32.totalorder %s57, %s58
      %p70 = scmp.eq.s32.totalorder %s27, 1
      %p71 = por %p69, %p70
      %p73 = scmp.ne.s32.totalorder %s58, %s72
      %p74 = scmp.eq.s32.totalorder %s27, 0
      %p75 = por %p73, %p74
      %s77 = sadd.s32 %s76, 1
      %p80 = scmp.eq.s32.totalorder %s21, 1
      %p81 = scmp.ne.s32.totalorder %s76, %s78
      %p82 = scmp.eq.s32.totalorder %s21, 0
      %p83 = por %p81, %p82
      %p84 = scmp.ne.s32.totalorder %s76, %s78
      %p85 = scmp.eq.s32.totalorder %s26, 1
      %p86 = por %p84, %p85
      %p87 = scmp.ne.s32.totalorder %s78, %s79
      %p88 = scmp.eq.s32.totalorder %s26, 0
      %p89 = por %p87, %p88
      %p90 = scmp.ne.s32.totalorder %s78, %s79
      %p91 = scmp.eq.s32.totalorder %s27, 1
      %p92 = por %p90, %p91
      %p94 = scmp.ne.s32.totalorder %s79, %s93
      %p95 = scmp.eq.s32.totalorder %s27, 0
      %p96 = por %p94, %p95
      %s98 = sadd.s32 %s97, 1
      %p101 = scmp.eq.s32.totalorder %s21, 1
      %p102 = scmp.ne.s32.totalorder %s97, %s99
      %p103 = scmp.eq.s32.totalorder %s21, 0
      %p104 = por %p102, %p103
      %p105 = scmp.ne.s32.totalorder %s97, %s99
      %p106 = scmp.eq.s32.totalorder %s26, 1
      %p107 = por %p105, %p106
      %p108 = scmp.ne.s32.totalorder %s99, %s100
      %p109 = scmp.eq.s32.totalorder %s26, 0
      %p110 = por %p108, %p109
      %p111 = scmp.ne.s32.totalorder %s99, %s100
      %p112 = scmp.eq.s32.totalorder %s27, 1
      %p113 = por %p111, %p112
      %p115 = scmp.ne.s32.totalorder %s100, %s114
      %p116 = scmp.eq.s32.totalorder %s27, 0
      %p117 = por %p115, %p116
      %s119 = sadd.s32 %s118, 1
      %p122 = scmp.eq.s32.totalorder %s21, 1
      %p123 = scmp.ne.s32.totalorder %s118, %s120
      %p124 = scmp.eq.s32.totalorder %s21, 0
      %p125 = por %p123, %p124
      %p126 = scmp.ne.s32.totalorder %s118, %s120
      %p127 = scmp.eq.s32.totalorder %s26, 1
      %p128 = por %p126, %p127
      %p129 = scmp.ne.s32.totalorder %s120, %s121
      %p130 = scmp.eq.s32.totalorder %s26, 0
      %p131 = por %p129, %p130
      %p132 = scmp.ne.s32.totalorder %s120, %s121
      %p133 = scmp.eq.s32.totalorder %s27, 1
      %p134 = por %p132, %p133
      %p136 = scmp.ne.s32.totalorder %s121, %s135
      %p137 = scmp.eq.s32.totalorder %s27, 0
      %p138 = por %p136, %p137
      %s140 = sadd.s32 %s139, 1
      %p143 = scmp.eq.s32.totalorder %s21, 1
      %p144 = scmp.ne.s32.totalorder %s139, %s141
      %p145 = scmp.eq.s32.totalorder %s21, 0
      %p146 = por %p144, %p145
      %p147 = scmp.ne.s32.totalorder %s139, %s141
      %p148 = scmp.eq.s32.totalorder %s26, 1
      %p149 = por %p147, %p148
      %p150 = scmp.ne.s32.totalorder %s141, %s142
      %p151 = scmp.eq.s32.totalorder %s26, 0
      %p152 = por %p150, %p151
      %p153 = scmp.ne.s32.totalorder %s141, %s142
      %p154 = scmp.eq.s32.totalorder %s27, 1
      %p155 = por %p153, %p154
      %p157 = scmp.ne.s32.totalorder %s142, %s156
      %p158 = scmp.eq.s32.totalorder %s27, 0
      %p159 = por %p157, %p158
      %s161 = sadd.s32 %s160, 1
      %p164 = scmp.eq.s32.totalorder %s21, 1
      %p165 = scmp.ne.s32.totalorder %s160, %s162
      %p166 = scmp.eq.s32.totalorder %s21, 0
      %p167 = por %p165, %p166
      %p168 = scmp.ne.s32.totalorder %s160, %s162
      %p169 = scmp.eq.s32.totalorder %s26, 1
      %p170 = por %p168, %p169
      %p171 = scmp.ne.s32.totalorder %s162, %s163
      %p172 = scmp.eq.s32.totalorder %s26, 0
      %p173 = por %p171, %p172
      %p174 = scmp.ne.s32.totalorder %s162, %s163
      %p175 = scmp.eq.s32.totalorder %s27, 1
      %p176 = por %p174, %p175
      %p178 = scmp.ne.s32.totalorder %s163, %s177
      %p179 = scmp.eq.s32.totalorder %s27, 0
      %p180 = por %p178, %p179
      %s182 = sadd.s32 %s181, 1
      %p185 = scmp.eq.s32.totalorder %s21, 1
      %p186 = scmp.ne.s32.totalorder %s181, %s183
      %p187 = scmp.eq.s32.totalorder %s21, 0
      %p188 = por %p186, %p187
      %p189 = scmp.ne.s32.totalorder %s181, %s183
      %p190 = scmp.eq.s32.totalorder %s26, 1
      %p191 = por %p189, %p190
      %p192 = scmp.ne.s32.totalorder %s183, %s184
      %p193 = scmp.eq.s32.totalorder %s26, 0
      %p194 = por %p192, %p193
      %p195 = scmp.ne.s32.totalorder %s183, %s184
      %p196 = scmp.eq.s32.totalorder %s27, 1
      %p197 = por %p195, %p196
      %p199 = scmp.ne.s32.totalorder %s184, %s198
      %p200 = scmp.eq.s32.totalorder %s27, 0
      %p201 = por %p199, %p200
      %s203 = sadd.s32 %s202, 1
      %p206 = scmp.eq.s32.totalorder %s21, 1
      %p207 = scmp.ne.s32.totalorder %s202, %s204
      %p208 = scmp.eq.s32.totalorder %s21, 0
      %p209 = por %p207, %p208
      %p210 = scmp.ne.s32.totalorder %s202, %s204
      %p211 = scmp.eq.s32.totalorder %s26, 1
      %p212 = por %p210, %p211
      %p213 = scmp.ne.s32.totalorder %s204, %s205
      %p214 = scmp.eq.s32.totalorder %s26, 0
      %p215 = por %p213, %p214
      %p216 = scmp.ne.s32.totalorder %s204, %s205
      %p217 = scmp.eq.s32.totalorder %s27, 1
      %p218 = por %p216, %p217
      %p220 = scmp.ne.s32.totalorder %s205, %s219
      %p221 = scmp.eq.s32.totalorder %s27, 0
      %p222 = por %p220, %p221
      %s224 = sadd.s32 %s223, 1
      %p227 = scmp.eq.s32.totalorder %s21, 1
      %p228 = scmp.ne.s32.totalorder %s223, %s225
      %p229 = scmp.eq.s32.totalorder %s21, 0
      %p230 = por %p228, %p229
      %p231 = scmp.ne.s32.totalorder %s223, %s225
      %p232 = scmp.eq.s32.totalorder %s26, 1
      %p233 = por %p231, %p232
      %p234 = scmp.ne.s32.totalorder %s225, %s226
      %p235 = scmp.eq.s32.totalorder %s26, 0
      %p236 = por %p234, %p235
      %p237 = scmp.ne.s32.totalorder %s225, %s226
      %p238 = scmp.eq.s32.totalorder %s27, 1
      %p239 = por %p237, %p238
      %p241 = scmp.ne.s32.totalorder %s226, %s240
      %p242 = scmp.eq.s32.totalorder %s27, 0
      %p243 = por %p241, %p242
      %s245 = sadd.s32 %s244, 1
      %p248 = scmp.eq.s32.totalorder %s21, 1
      %p249 = scmp.ne.s32.totalorder %s244, %s246
      %p250 = scmp.eq.s32.totalorder %s21, 0
      %p251 = por %p249, %p250
      %p252 = scmp.ne.s32.totalorder %s244, %s246
      %p253 = scmp.eq.s32.totalorder %s26, 1
      %p254 = por %p252, %p253
      %p255 = scmp.ne.s32.totalorder %s246, %s247
      %p256 = scmp.eq.s32.totalorder %s26, 0
      %p257 = por %p255, %p256
      %p258 = scmp.ne.s32.totalorder %s246, %s247
      %p259 = scmp.eq.s32.totalorder %s27, 1
      %p260 = por %p258, %p259
      %p262 = scmp.ne.s32.totalorder %s247, %s261
      %p263 = scmp.eq.s32.totalorder %s27, 0
      %p264 = por %p262, %p263
      %s266 = sadd.s32 %s265, 1
      %p269 = scmp.eq.s32.totalorder %s21, 1
      %p270 = scmp.ne.s32.totalorder %s265, %s267
      %p271 = scmp.eq.s32.totalorder %s21, 0
      %p272 = por %p270, %p271
      %p273 = scmp.ne.s32.totalorder %s265, %s267
      %p274 = scmp.eq.s32.totalorder %s26, 1
      %p275 = por %p273, %p274
      %p276 = scmp.ne.s32.totalorder %s267, %s268
      %p277 = scmp.eq.s32.totalorder %s26, 0
      %p278 = por %p276, %p277
      %p279 = scmp.ne.s32.totalorder %s267, %s268
      %p280 = scmp.eq.s32.totalorder %s27, 1
      %p281 = por %p279, %p280
      %p283 = scmp.ne.s32.totalorder %s268, %s282
      %p284 = scmp.eq.s32.totalorder %s27, 0
      %p285 = por %p283, %p284
      %s286 = ssub.s32 %s21, %s28
      %p287 = scmp.eq.s32.totalorder %s286, 0
      %s289 = sadd.s32 %s288, 1
      %s290 = scalar_select %p287, %s288, %s289
      %p293 = pneg %p287
      %p294 = scmp.eq.s32.totalorder %s21, 1
      %p295 = por %p293, %p294
      %p296 = scmp.ne.s32.totalorder %s288, %s291
      %p297 = scmp.eq.s32.totalorder %s21, 0
      %p298 = por %p296, %p297
      %p299 = scmp.ne.s32.totalorder %s288, %s291
      %p300 = scmp.eq.s32.totalorder %s26, 1
      %p301 = por %p299, %p300
      %p302 = scmp.ne.s32.totalorder %s291, %s292
      %p303 = scmp.eq.s32.totalorder %s26, 0
      %p304 = por %p302, %p303
      %p305 = scmp.ne.s32.totalorder %s291, %s292
      %p306 = scmp.eq.s32.totalorder %s27, 1
      %p307 = por %p305, %p306
      %p309 = scmp.ne.s32.totalorder %s292, %s308
      %p310 = scmp.eq.s32.totalorder %s27, 0
      %p311 = por %p309, %p310
      %p312 = scmp.le.s32.totalorder 1, %s21
      %p313 = scmp.lt.s32.totalorder %s21, 3
      %p314 = pnand %p312, %p313
      %p315 = pneg %p314
      // Predicated region
      $region9: #{tpu_custom_call.1} parent=5 // pred_check
        _
      $region10: #{tpu_custom_call.1} parent=5 // pred_check_branch
        %317 = sbr.rel (%p314) target = $region12
      $region11: #{tpu_custom_call.1} parent=5 // pred_region
        %s318 = ssub.s32 %s21, 1
        // Predicated region
        $region13: #{tpu_custom_call.1} parent=11 // pred_check
          %p319 = pneg %p68
        $region14: #{tpu_custom_call.1} parent=11 // pred_check_branch
          %321 = sbr.rel (%p319) target = $region16
        $region15: #{tpu_custom_call.1} parent=11 // pred_region
          _
        $region16: #{tpu_custom_call.1} parent=11 // pred_fallthru
          _
        // Predicated region
        $region17: #{tpu_custom_call.1} parent=11 // pred_check
          %p322 = pneg %p89
        $region18: #{tpu_custom_call.1} parent=11 // pred_check_branch
          %324 = sbr.rel (%p322) target = $region20
        $region19: #{tpu_custom_call.1} parent=11 // pred_region
          _
        $region20: #{tpu_custom_call.1} parent=11 // pred_fallthru
          _
        // Predicated region
        $region21: #{tpu_custom_call.1} parent=11 // pred_check
          %p325 = pneg %p110
        $region22: #{tpu_custom_call.1} parent=11 // pred_check_branch
          %327 = sbr.rel (%p325) target = $region24
        $region23: #{tpu_custom_call.1} parent=11 // pred_region
          _
        $region24: #{tpu_custom_call.1} parent=11 // pred_fallthru
          _
        // Predicated region
        $region25: #{tpu_custom_call.1} parent=11 // pred_check
          %p328 = pneg %p131
        $region26: #{tpu_custom_call.1} parent=11 // pred_check_branch
          %330 = sbr.rel (%p328) target = $region28
        $region27: #{tpu_custom_call.1} parent=11 // pred_region
          _
        $region28: #{tpu_custom_call.1} parent=11 // pred_fallthru
          _
        // Predicated region
        $region29: #{tpu_custom_call.1} parent=11 // pred_check
          %p331 = pneg %p152
        $region30: #{tpu_custom_call.1} parent=11 // pred_check_branch
          %333 = sbr.rel (%p331) target = $region32
        $region31: #{tpu_custom_call.1} parent=11 // pred_region
          _
        $region32: #{tpu_custom_call.1} parent=11 // pred_fallthru
          _
        // Predicated region
        $region33: #{tpu_custom_call.1} parent=11 // pred_check
          %p334 = pneg %p173
        $region34: #{tpu_custom_call.1} parent=11 // pred_check_branch
          %336 = sbr.rel (%p334) target = $region36
        $region35: #{tpu_custom_call.1} parent=11 // pred_region
          _
        $region36: #{tpu_custom_call.1} parent=11 // pred_fallthru
          _
        // Predicated region
        $region37: #{tpu_custom_call.1} parent=11 // pred_check
          %p337 = pneg %p194
        $region38: #{tpu_custom_call.1} parent=11 // pred_check_branch
          %339 = sbr.rel (%p337) target = $region40
        $region39: #{tpu_custom_call.1} parent=11 // pred_region
          _
        $region40: #{tpu_custom_call.1} parent=11 // pred_fallthru
          _
        // Predicated region
        $region41: #{tpu_custom_call.1} parent=11 // pred_check
          %p340 = pneg %p215
        $region42: #{tpu_custom_call.1} parent=11 // pred_check_branch
          %342 = sbr.rel (%p340) target = $region44
        $region43: #{tpu_custom_call.1} parent=11 // pred_region
          _
        $region44: #{tpu_custom_call.1} parent=11 // pred_fallthru
          _
        // Predicated region
        $region45: #{tpu_custom_call.1} parent=11 // pred_check
          %p343 = pneg %p236
        $region46: #{tpu_custom_call.1} parent=11 // pred_check_branch
          %345 = sbr.rel (%p343) target = $region48
        $region47: #{tpu_custom_call.1} parent=11 // pred_region
          _
        $region48: #{tpu_custom_call.1} parent=11 // pred_fallthru
          _
        // Predicated region
        $region49: #{tpu_custom_call.1} parent=11 // pred_check
          %p346 = pneg %p257
        $region50: #{tpu_custom_call.1} parent=11 // pred_check_branch
          %348 = sbr.rel (%p346) target = $region52
        $region51: #{tpu_custom_call.1} parent=11 // pred_region
          _
        $region52: #{tpu_custom_call.1} parent=11 // pred_fallthru
          _
        // Predicated region
        $region53: #{tpu_custom_call.1} parent=11 // pred_check
          %p349 = pneg %p278
        $region54: #{tpu_custom_call.1} parent=11 // pred_check_branch
          %351 = sbr.rel (%p349) target = $region56
        $region55: #{tpu_custom_call.1} parent=11 // pred_region
          _
        $region56: #{tpu_custom_call.1} parent=11 // pred_fallthru
          _
      $region12: #{tpu_custom_call.1} parent=5 // pred_fallthru
        _
      %p352 = scmp.lt.s32.totalorder %s21, 2
      // Predicated region
      $region57: #{tpu_custom_call.1} parent=5 // pred_check
        %p353 = pneg %p352
      $region58: #{tpu_custom_call.1} parent=5 // pred_check_branch
        %355 = sbr.rel (%p353) target = $region60
      $region59: #{tpu_custom_call.1} parent=5 // pred_region
        // Predicated region
        $region61: #{tpu_custom_call.1} parent=59 // pred_check
          %p356 = pneg %p41
        $region62: #{tpu_custom_call.1} parent=59 // pred_check_branch
          %358 = sbr.rel (%p356) target = $region64
        $region63: #{tpu_custom_call.1} parent=59 // pred_region
          %s359 = smul.u32 16, %s21
          %p360 = scmp.lt.s32.totalorder %s359, 31
          %s361 = scalar_select %p360, %s359, 31
          %s362 = smul.addr %s361, 4
          %s363 = scalar_lea.vmem %s0, %s362
          %s364 = smul.u32 16, %s21
        $region64: #{tpu_custom_call.1} parent=59 // pred_fallthru
          _
      $region60: #{tpu_custom_call.1} parent=5 // pred_fallthru
        _
      %p365 = scmp.le.s32.totalorder 1, %s21
      %p366 = scmp.lt.s32.totalorder %s21, 3
      %p367 = pnand %p365, %p366
      %p368 = pneg %p367
      // Predicated region
      $region65: #{tpu_custom_call.1} parent=5 // pred_check
        _
      $region66: #{tpu_custom_call.1} parent=5 // pred_check_branch
        %370 = sbr.rel (%p367) target = $region68
      $region67: #{tpu_custom_call.1} parent=5 // pred_region
        %s371 = ssub.s32 %s21, 1
        %s372 = smul.u32 16, %s26
        %p373 = scmp.lt.s32.totalorder %s372, 31
        %s374 = scalar_select %p373, %s372, 31
        %s375 = smul.addr %s374, 4
        %s376 = scalar_lea.vmem %s0, %s375
        %p377 = pneg %p47
        %p378 = pneg %p44
        %p379 = pneg %p68
        %p380 = pneg %p65
        %p381 = pneg %p89
        %p382 = pneg %p86
        %p383 = pneg %p110
        %p384 = pneg %p107
        %p385 = pneg %p131
        %p386 = pneg %p128
        %p387 = pneg %p152
        %p388 = pneg %p149
        %p389 = pneg %p173
        %p390 = pneg %p170
        %p391 = pneg %p194
        %p392 = pneg %p191
        %p393 = pneg %p215
        %p394 = pneg %p212
        %p395 = pneg %p236
        %p396 = pneg %p233
        %p397 = pneg %p257
        %p398 = pneg %p254
        %p399 = pneg %p278
        %p400 = pneg %p275
        %p401 = pneg %p304
        %p402 = pneg %p301
        %s403 = sand.u32 %s291, 1
        %s404 = scalar_lea.sflag [#allocation3], %s403
        %s405 = sand.u32 %s291, 1
        %s406 = smul.addr %s405, 128
        %s407 = scalar_lea.vmem [#allocation2], %s406
        %s408 = smul.u32 16, %s26
        %p409 = scmp.lt.s32.totalorder %s408, 31
        %s410 = scalar_select %p409, %s408, 31
        %s411 = smul.addr %s410, 4
        %s412 = scalar_lea.vmem %s0, %s411
        %s413 = smul.u32 16, %s26
        %s414 = smul.u32 16, %s26
        %v416 = vld [vmem:[%s412] sm:$0xf]
        %v417 = vld [vmem:[%s412 + $0x4] sm:$0xf]
        %v418 = vld [vmem:[%s412 + $0x8] sm:$0xf]
        %v419 = vld [vmem:[%s412 + $0xc] sm:$0xf]
        %v420 = vld [vmem:[%s412 + $0x10] sm:$0xf]
        %v421 = vld [vmem:[%s412 + $0x14] sm:$0xf]
        %v422 = vld [vmem:[%s412 + $0x18] sm:$0xf]
        %v423 = vld [vmem:[%s412 + $0x1c] sm:$0xf]
        %v424 = vld [vmem:[%s412 + $0x20] sm:$0xf]
        %v425 = vld [vmem:[%s412 + $0x24] sm:$0xf]
        %v426 = vld [vmem:[%s412 + $0x28] sm:$0xf]
        %v427 = vld [vmem:[%s412 + $0x2c] sm:$0xf]
        %v428 = vld [vmem:[%s412 + $0x30] sm:$0xf]
        %v429 = vld [vmem:[%s412 + $0x34] sm:$0xf]
        %v430 = vld [vmem:[%s412 + $0x38] sm:$0xf]
        %v431 = vld [vmem:[%s412 + $0x3c] sm:$0xf]
        %v432 = vld [vmem:[%s1] sm:$0xf]
        %v433 = vld [vmem:[%s1 + $0x4] sm:$0xf]
        %v434 = vld [vmem:[%s1 + $0x8] sm:$0xf]
        %v435 = vld [vmem:[%s1 + $0xc] sm:$0xf]
        %v436 = vld [vmem:[%s2] sm:$0x1]
        %v438 = vlaneseq
        %v439 = vshrl.u32 %v438, 7
        %v440 = vsub.s32 0, %v439
        %v441 = vrot.slane %v436, %v440
        %v459 = vunpack.c.l.b16 %v416
        %v460 = vunpack.c.l.b16 %v417
        %v461 = vunpack.c.l.b16 %v418
        %v462 = vunpack.c.l.b16 %v419
        %v463 = vunpack.c.l.b16 %v420
        %v464 = vunpack.c.l.b16 %v421
        %v465 = vunpack.c.l.b16 %v422
        %v466 = vunpack.c.l.b16 %v423
        %v467 = vunpack.c.l.b16 %v424
        %v468 = vunpack.c.l.b16 %v425
        %v469 = vunpack.c.l.b16 %v426
        %v470 = vunpack.c.l.b16 %v427
        %v471 = vunpack.c.l.b16 %v428
        %v472 = vunpack.c.l.b16 %v429
        %v473 = vunpack.c.l.b16 %v430
        %v474 = vunpack.c.l.b16 %v431
        %v475 = vpack.c.b16 %v460, %v459
        %v476 = vpack.c.b16 %v462, %v461
        %v477 = vpack.c.b16 %v464, %v463
        %v478 = vpack.c.b16 %v466, %v465
        %v479 = vpack.c.b16 %v468, %v467
        %v480 = vpack.c.b16 %v470, %v469
        %v481 = vpack.c.b16 %v472, %v471
        %v482 = vpack.c.b16 %v474, %v473
        %v487 = vunpack.c.l.b16 %v432
        %v488 = vunpack.c.l.b16 %v433
        %v489 = vunpack.c.l.b16 %v434
        %v490 = vunpack.c.l.b16 %v435
        %v491 = vpack.c.b16 %v488, %v487
        %v492 = vpack.c.b16 %v490, %v489
        %vm495 = vcmask 261120
        %v497 = vsel %vm495, %v475, 0
        %v500 = vsel %vm495, %v476, 0
        %v503 = vsel %vm495, %v477, 0
        %v506 = vsel %vm495, %v478, 0
        %v509 = vsel %vm495, %v479, 0
        %v512 = vsel %vm495, %v480, 0
        %v515 = vsel %vm495, %v481, 0
        %v518 = vsel %vm495, %v482, 0
        %520 = vmatprep.subr.bf16.mxu0 0
        %521 = vmatpush1.bf16.msra.mxu0 %v491
        %522 = vmatprep.subr.bf16.mxu0 0
        %523 = vmatpush1.bf16.msra.mxu0 %v492
        %524 = vmatprep.subr.bf16.mxu0 0
        %525 = vmatpush1.bf16.msra.mxu0 0
        %526 = vmatprep.subr.bf16.mxu0 0
        %527 = vmatpush1.bf16.msra.mxu0 0
        %528 = vmatprep.subr.bf16.mxu0 0
        %529 = vmatpush1.bf16.msra.mxu0 0
        %530 = vmatprep.subr.bf16.mxu0 0
        %531 = vmatpush1.bf16.msra.mxu0 0
        %532 = vmatprep.subr.bf16.mxu0 0
        %533 = vmatpush1.bf16.msra.mxu0 0
        %534 = vmatprep.subr.bf16.mxu0 0
        %535 = vmatpush1.bf16.msra.mxu0 0
        %536 = vmatprep.subr.bf16.mxu0 0
        %537 = vmatpush1.bf16.msra.mxu0 0
        %538 = vmatprep.subr.bf16.mxu0 0
        %539 = vmatpush1.bf16.msra.mxu0 0
        %540 = vmatprep.subr.bf16.mxu0 0
        %541 = vmatpush1.bf16.msra.mxu0 0
        %542 = vmatprep.subr.bf16.mxu0 0
        %543 = vmatpush1.bf16.msra.mxu0 0
        %544 = vmatprep.subr.bf16.mxu0 0
        %545 = vmatpush1.bf16.msra.mxu0 0
        %546 = vmatprep.subr.bf16.mxu0 0
        %547 = vmatpush1.bf16.msra.mxu0 0
        %548 = vmatprep.subr.bf16.mxu0 0
        %549 = vmatpush1.bf16.msra.mxu0 0
        %550 = vmatprep.subr.bf16.mxu0 0
        %551 = vmatpush1.bf16.msra.mxu0 0
        %552 = vmatprep.mubr.bf16.mxu0 0
        %553 = vmatmul.mubr.bf16.gmra.mrb[0].mxu0 %v497
        %v554 = vpop.f32.mrb[0].mxu0
        %v555 = vadd.f32 %v441, %v554
        %v556 = vpop.f32.mrb[0].mxu0
        %v557 = vpop.f32.mrb[0].mxu0
        %v558 = vadd.f32 %v441, %v557
        %v559 = vpop.f32.mrb[0].mxu0
        %560 = vmatprep.mubr.bf16.mxu0 0
        %561 = vmatmul.mubr.bf16.gmra.mrb[0].mxu0 %v500
        %v562 = vpop.f32.mrb[0].mxu0
        %v563 = vadd.f32 %v441, %v562
        %v564 = vpop.f32.mrb[0].mxu0
        %v565 = vpop.f32.mrb[0].mxu0
        %v566 = vadd.f32 %v441, %v565
        %v567 = vpop.f32.mrb[0].mxu0
        %568 = vmatprep.mubr.bf16.mxu0 0
        %569 = vmatmul.mubr.bf16.gmra.mrb[0].mxu0 %v503
        %v570 = vpop.f32.mrb[0].mxu0
        %v571 = vadd.f32 %v441, %v570
        %v572 = vpop.f32.mrb[0].mxu0
        %v573 = vpop.f32.mrb[0].mxu0
        %v574 = vadd.f32 %v441, %v573
        %v575 = vpop.f32.mrb[0].mxu0
        %576 = vmatprep.mubr.bf16.mxu0 0
        %577 = vmatmul.mubr.bf16.gmra.mrb[0].mxu0 %v506
        %v578 = vpop.f32.mrb[0].mxu0
        %v579 = vadd.f32 %v441, %v578
        %v580 = vpop.f32.mrb[0].mxu0
        %v581 = vpop.f32.mrb[0].mxu0
        %v582 = vadd.f32 %v441, %v581
        %v583 = vpop.f32.mrb[0].mxu0
        %584 = vmatprep.mubr.bf16.mxu0 0
        %585 = vmatmul.mubr.bf16.gmra.mrb[0].mxu0 %v509
        %v586 = vpop.f32.mrb[0].mxu0
        %v587 = vadd.f32 %v441, %v586
        %v588 = vpop.f32.mrb[0].mxu0
        %v589 = vpop.f32.mrb[0].mxu0
        %v590 = vadd.f32 %v441, %v589
        %v591 = vpop.f32.mrb[0].mxu0
        %592 = vmatprep.mubr.bf16.mxu0 0
        %593 = vmatmul.mubr.bf16.gmra.mrb[0].mxu0 %v512
        %v594 = vpop.f32.mrb[0].mxu0
        %v595 = vadd.f32 %v441, %v594
        %v596 = vpop.f32.mrb[0].mxu0
        %v597 = vpop.f32.mrb[0].mxu0
        %v598 = vadd.f32 %v441, %v597
        %v599 = vpop.f32.mrb[0].mxu0
        %600 = vmatprep.mubr.bf16.mxu0 0
        %601 = vmatmul.mubr.bf16.gmra.mrb[0].mxu0 %v515
        %v602 = vpop.f32.mrb[0].mxu0
        %v603 = vadd.f32 %v441, %v602
        %v604 = vpop.f32.mrb[0].mxu0
        %v605 = vpop.f32.mrb[0].mxu0
        %v606 = vadd.f32 %v441, %v605
        %v607 = vpop.f32.mrb[0].mxu0
        %608 = vmatprep.mubr.bf16.mxu0 0
        %609 = vmatmul.mubr.bf16.gmra.mrb[0].mxu0 %v518
        %v610 = vpop.f32.mrb[0].mxu0
        %v611 = vadd.f32 %v441, %v610
        %v612 = vpop.f32.mrb[0].mxu0
        %v613 = vpop.f32.mrb[0].mxu0
        %v614 = vadd.f32 %v441, %v613
        %v615 = vpop.f32.mrb[0].mxu0
        %616 = vdwg.mxu0
        %v617 = vld [vmem:[%s3] sm:$0x1]
        %v618 = vld [vmem:[%s4] sm:$0x1]
        %vm619 = vcmask 523264
        %v620 = vsel %vm619, %v555, 0.0
        %621 = vadd.xlane.f32.xlu0 %v620
        %v622 = vpop.xlane.xlu0 %621
        %v623 = vsel %vm619, %v558, 0.0
        %624 = vadd.xlane.f32.xlu0 %v623
        %v625 = vpop.xlane.xlu0 %624
        %v626 = vsel %vm619, %v563, 0.0
        %627 = vadd.xlane.f32.xlu0 %v626
        %v628 = vpop.xlane.xlu0 %627
        %v629 = vsel %vm619, %v566, 0.0
        %630 = vadd.xlane.f32.xlu0 %v629
        %v631 = vpop.xlane.xlu0 %630
        %v632 = vsel %vm619, %v571, 0.0
        %633 = vadd.xlane.f32.xlu0 %v632
        %v634 = vpop.xlane.xlu0 %633
        %v635 = vsel %vm619, %v574, 0.0
        %636 = vadd.xlane.f32.xlu0 %v635
        %v637 = vpop.xlane.xlu0 %636
        %v638 = vsel %vm619, %v579, 0.0
        %639 = vadd.xlane.f32.xlu0 %v638
        %v640 = vpop.xlane.xlu0 %639
        %v641 = vsel %vm619, %v582, 0.0
        %642 = vadd.xlane.f32.xlu0 %v641
        %v643 = vpop.xlane.xlu0 %642
        %v644 = vsel %vm619, %v587, 0.0
        %645 = vadd.xlane.f32.xlu0 %v644
        %v646 = vpop.xlane.xlu0 %645
        %v647 = vsel %vm619, %v590, 0.0
        %648 = vadd.xlane.f32.xlu0 %v647
        %v649 = vpop.xlane.xlu0 %648
        %v650 = vsel %vm619, %v595, 0.0
        %651 = vadd.xlane.f32.xlu0 %v650
        %v652 = vpop.xlane.xlu0 %651
        %v653 = vsel %vm619, %v598, 0.0
        %654 = vadd.xlane.f32.xlu0 %v653
        %v655 = vpop.xlane.xlu0 %654
        %v656 = vsel %vm619, %v603, 0.0
        %657 = vadd.xlane.f32.xlu0 %v656
        %v658 = vpop.xlane.xlu0 %657
        %v659 = vsel %vm619, %v606, 0.0
        %660 = vadd.xlane.f32.xlu0 %v659
        %v661 = vpop.xlane.xlu0 %660
        %v662 = vsel %vm619, %v611, 0.0
        %663 = vadd.xlane.f32.xlu0 %v662
        %v664 = vpop.xlane.xlu0 %663
        %v665 = vsel %vm619, %v614, 0.0
        %666 = vadd.xlane.f32.xlu0 %v665
        %v667 = vpop.xlane.xlu0 %666
        %v668 = vrcp.pop 64.0
        %v669 = vmul.f32 %v622, %v668
        %v670 = vmul.f32 %v625, %v668
        %v671 = vmul.f32 %v628, %v668
        %v672 = vmul.f32 %v631, %v668
        %v673 = vmul.f32 %v634, %v668
        %v674 = vmul.f32 %v637, %v668
        %v675 = vmul.f32 %v640, %v668
        %v676 = vmul.f32 %v643, %v668
        %v677 = vmul.f32 %v646, %v668
        %v678 = vmul.f32 %v649, %v668
        %v679 = vmul.f32 %v652, %v668
        %v680 = vmul.f32 %v655, %v668
        %v681 = vmul.f32 %v658, %v668
        %v682 = vmul.f32 %v661, %v668
        %v683 = vmul.f32 %v664, %v668
        %v684 = vmul.f32 %v667, %v668
        %v685 = vmul.f32 %v555, %v555
        %v686 = vmul.f32 %v558, %v558
        %v687 = vmul.f32 %v563, %v563
        %v688 = vmul.f32 %v566, %v566
        %v689 = vmul.f32 %v571, %v571
        %v690 = vmul.f32 %v574, %v574
        %v691 = vmul.f32 %v579, %v579
        %v692 = vmul.f32 %v582, %v582
        %v693 = vmul.f32 %v587, %v587
        %v694 = vmul.f32 %v590, %v590
        %v695 = vmul.f32 %v595, %v595
        %v696 = vmul.f32 %v598, %v598
        %v697 = vmul.f32 %v603, %v603
        %v698 = vmul.f32 %v606, %v606
        %v699 = vmul.f32 %v611, %v611
        %v700 = vmul.f32 %v614, %v614
        %v701 = vsel %vm619, %v685, 0.0
        %702 = vadd.xlane.f32.xlu0 %v701
        %v703 = vpop.xlane.xlu0 %702
        %v704 = vsel %vm619, %v686, 0.0
        %705 = vadd.xlane.f32.xlu0 %v704
        %v706 = vpop.xlane.xlu0 %705
        %v707 = vsel %vm619, %v687, 0.0
        %708 = vadd.xlane.f32.xlu0 %v707
        %v709 = vpop.xlane.xlu0 %708
        %v710 = vsel %vm619, %v688, 0.0
        %711 = vadd.xlane.f32.xlu0 %v710
        %v712 = vpop.xlane.xlu0 %711
        %v713 = vsel %vm619, %v689, 0.0
        %714 = vadd.xlane.f32.xlu0 %v713
        %v715 = vpop.xlane.xlu0 %714
        %v716 = vsel %vm619, %v690, 0.0
        %717 = vadd.xlane.f32.xlu0 %v716
        %v718 = vpop.xlane.xlu0 %717
        %v719 = vsel %vm619, %v691, 0.0
        %720 = vadd.xlane.f32.xlu0 %v719
        %v721 = vpop.xlane.xlu0 %720
        %v722 = vsel %vm619, %v692, 0.0
        %723 = vadd.xlane.f32.xlu0 %v722
        %v724 = vpop.xlane.xlu0 %723
        %v725 = vsel %vm619, %v693, 0.0
        %726 = vadd.xlane.f32.xlu0 %v725
        %v727 = vpop.xlane.xlu0 %726
        %v728 = vsel %vm619, %v694, 0.0
        %729 = vadd.xlane.f32.xlu0 %v728
        %v730 = vpop.xlane.xlu0 %729
        %v731 = vsel %vm619, %v695, 0.0
        %732 = vadd.xlane.f32.xlu0 %v731
        %v733 = vpop.xlane.xlu0 %732
        %v734 = vsel %vm619, %v696, 0.0
        %735 = vadd.xlane.f32.xlu0 %v734
        %v736 = vpop.xlane.xlu0 %735
        %v737 = vsel %vm619, %v697, 0.0
        %738 = vadd.xlane.f32.xlu0 %v737
        %v739 = vpop.xlane.xlu0 %738
        %v740 = vsel %vm619, %v698, 0.0
        %741 = vadd.xlane.f32.xlu0 %v740
        %v742 = vpop.xlane.xlu0 %741
        %v743 = vsel %vm619, %v699, 0.0
        %744 = vadd.xlane.f32.xlu0 %v743
        %v745 = vpop.xlane.xlu0 %744
        %v746 = vsel %vm619, %v700, 0.0
        %747 = vadd.xlane.f32.xlu0 %v746
        %v748 = vpop.xlane.xlu0 %747
        %v749 = vmul.f32 %v703, %v668
        %v750 = vmul.f32 %v706, %v668
        %v751 = vmul.f32 %v709, %v668
        %v752 = vmul.f32 %v712, %v668
        %v753 = vmul.f32 %v715, %v668
        %v754 = vmul.f32 %v718, %v668
        %v755 = vmul.f32 %v721, %v668
        %v756 = vmul.f32 %v724, %v668
        %v757 = vmul.f32 %v727, %v668
        %v758 = vmul.f32 %v730, %v668
        %v759 = vmul.f32 %v733, %v668
        %v760 = vmul.f32 %v736, %v668
        %v761 = vmul.f32 %v739, %v668
        %v762 = vmul.f32 %v742, %v668
        %v763 = vmul.f32 %v745, %v668
        %v764 = vmul.f32 %v748, %v668
        %v765 = vmul.f32 %v669, %v669
        %v766 = vmul.f32 %v670, %v670
        %v767 = vmul.f32 %v671, %v671
        %v768 = vmul.f32 %v672, %v672
        %v769 = vmul.f32 %v673, %v673
        %v770 = vmul.f32 %v674, %v674
        %v771 = vmul.f32 %v675, %v675
        %v772 = vmul.f32 %v676, %v676
        %v773 = vmul.f32 %v677, %v677
        %v774 = vmul.f32 %v678, %v678
        %v775 = vmul.f32 %v679, %v679
        %v776 = vmul.f32 %v680, %v680
        %v777 = vmul.f32 %v681, %v681
        %v778 = vmul.f32 %v682, %v682
        %v779 = vmul.f32 %v683, %v683
        %v780 = vmul.f32 %v684, %v684
        %v781 = vsub.f32 %v749, %v765
        %v782 = vsub.f32 %v750, %v766
        %v783 = vsub.f32 %v751, %v767
        %v784 = vsub.f32 %v752, %v768
        %v785 = vsub.f32 %v753, %v769
        %v786 = vsub.f32 %v754, %v770
        %v787 = vsub.f32 %v755, %v771
        %v788 = vsub.f32 %v756, %v772
        %v789 = vsub.f32 %v757, %v773
        %v790 = vsub.f32 %v758, %v774
        %v791 = vsub.f32 %v759, %v775
        %v792 = vsub.f32 %v760, %v776
        %v793 = vsub.f32 %v761, %v777
        %v794 = vsub.f32 %v762, %v778
        %v795 = vsub.f32 %v763, %v779
        %v796 = vsub.f32 %v764, %v780
        %v797 = vmax.f32 %v781, 0.0
        %v798 = vmax.f32 %v782, 0.0
        %v799 = vmax.f32 %v783, 0.0
        %v800 = vmax.f32 %v784, 0.0
        %v801 = vmax.f32 %v785, 0.0
        %v802 = vmax.f32 %v786, 0.0
        %v803 = vmax.f32 %v787, 0.0
        %v804 = vmax.f32 %v788, 0.0
        %v805 = vmax.f32 %v789, 0.0
        %v806 = vmax.f32 %v790, 0.0
        %v807 = vmax.f32 %v791, 0.0
        %v808 = vmax.f32 %v792, 0.0
        %v809 = vmax.f32 %v793, 0.0
        %v810 = vmax.f32 %v794, 0.0
        %v811 = vmax.f32 %v795, 0.0
        %v812 = vmax.f32 %v796, 0.0
        %v813 = vsub.f32 %v555, %v669
        %v814 = vsub.f32 %v558, %v670
        %v815 = vsub.f32 %v563, %v671
        %v816 = vsub.f32 %v566, %v672
        %v817 = vsub.f32 %v571, %v673
        %v818 = vsub.f32 %v574, %v674
        %v819 = vsub.f32 %v579, %v675
        %v820 = vsub.f32 %v582, %v676
        %v821 = vsub.f32 %v587, %v677
        %v822 = vsub.f32 %v590, %v678
        %v823 = vsub.f32 %v595, %v679
        %v824 = vsub.f32 %v598, %v680
        %v825 = vsub.f32 %v603, %v681
        %v826 = vsub.f32 %v606, %v682
        %v827 = vsub.f32 %v611, %v683
        %v828 = vsub.f32 %v614, %v684
        %v829 = vadd.f32 %v797, 1e-05
        %v830 = vadd.f32 %v798, 1e-05
        %v831 = vadd.f32 %v799, 1e-05
        %v832 = vadd.f32 %v800, 1e-05
        %v833 = vadd.f32 %v801, 1e-05
        %v834 = vadd.f32 %v802, 1e-05
        %v835 = vadd.f32 %v803, 1e-05
        %v836 = vadd.f32 %v804, 1e-05
        %v837 = vadd.f32 %v805, 1e-05
        %v838 = vadd.f32 %v806, 1e-05
        %v839 = vadd.f32 %v807, 1e-05
        %v840 = vadd.f32 %v808, 1e-05
        %v841 = vadd.f32 %v809, 1e-05
        %v842 = vadd.f32 %v810, 1e-05
        %v843 = vadd.f32 %v811, 1e-05
        %v844 = vadd.f32 %v812, 1e-05
        %v845 = vrsqrt.pop %v829
        %v846 = vrsqrt.pop %v830
        %v847 = vrsqrt.pop %v831
        %v848 = vrsqrt.pop %v832
        %v849 = vrsqrt.pop %v833
        %v850 = vrsqrt.pop %v834
        %v851 = vrsqrt.pop %v835
        %v852 = vrsqrt.pop %v836
        %v853 = vrsqrt.pop %v837
        %v854 = vrsqrt.pop %v838
        %v855 = vrsqrt.pop %v839
        %v856 = vrsqrt.pop %v840
        %v857 = vrsqrt.pop %v841
        %v858 = vrsqrt.pop %v842
        %v859 = vrsqrt.pop %v843
        %v860 = vrsqrt.pop %v844
        %v861 = vmul.f32 %v813, %v845
        %v862 = vmul.f32 %v814, %v846
        %v863 = vmul.f32 %v815, %v847
        %v864 = vmul.f32 %v816, %v848
        %v865 = vmul.f32 %v817, %v849
        %v866 = vmul.f32 %v818, %v850
        %v867 = vmul.f32 %v819, %v851
        %v868 = vmul.f32 %v820, %v852
        %v869 = vmul.f32 %v821, %v853
        %v870 = vmul.f32 %v822, %v854
        %v871 = vmul.f32 %v823, %v855
        %v872 = vmul.f32 %v824, %v856
        %v873 = vmul.f32 %v825, %v857
        %v874 = vmul.f32 %v826, %v858
        %v875 = vmul.f32 %v827, %v859
        %v876 = vmul.f32 %v828, %v860
        %v878 = vlaneseq
        %v879 = vshrl.u32 %v878, 7
        %v880 = vsub.s32 0, %v879
        %v881 = vrot.slane %v617, %v880
        %v883 = vmul.f32 %v861, %v881
        %v884 = vmul.f32 %v862, %v881
        %v885 = vmul.f32 %v863, %v881
        %v886 = vmul.f32 %v864, %v881
        %v887 = vmul.f32 %v865, %v881
        %v888 = vmul.f32 %v866, %v881
        %v889 = vmul.f32 %v867, %v881
        %v890 = vmul.f32 %v868, %v881
        %v891 = vmul.f32 %v869, %v881
        %v892 = vmul.f32 %v870, %v881
        %v893 = vmul.f32 %v871, %v881
        %v894 = vmul.f32 %v872, %v881
        %v895 = vmul.f32 %v873, %v881
        %v896 = vmul.f32 %v874, %v881
        %v897 = vmul.f32 %v875, %v881
        %v898 = vmul.f32 %v876, %v881
        %v900 = vlaneseq
        %v901 = vshrl.u32 %v900, 7
        %v902 = vsub.s32 0, %v901
        %v903 = vrot.slane %v618, %v902
        %v905 = vadd.f32 %v883, %v903
        %v906 = vadd.f32 %v884, %v903
        %v907 = vadd.f32 %v885, %v903
        %v908 = vadd.f32 %v886, %v903
        %v909 = vadd.f32 %v887, %v903
        %v910 = vadd.f32 %v888, %v903
        %v911 = vadd.f32 %v889, %v903
        %v912 = vadd.f32 %v890, %v903
        %v913 = vadd.f32 %v891, %v903
        %v914 = vadd.f32 %v892, %v903
        %v915 = vadd.f32 %v893, %v903
        %v916 = vadd.f32 %v894, %v903
        %v917 = vadd.f32 %v895, %v903
        %v918 = vadd.f32 %v896, %v903
        %v919 = vadd.f32 %v897, %v903
        %v920 = vadd.f32 %v898, %v903
        %v921 = vmax.f32 %v905, 0.0
        %v922 = vmax.f32 %v906, 0.0
        %v923 = vmax.f32 %v907, 0.0
        %v924 = vmax.f32 %v908, 0.0
        %v925 = vmax.f32 %v909, 0.0
        %v926 = vmax.f32 %v910, 0.0
        %v927 = vmax.f32 %v911, 0.0
        %v928 = vmax.f32 %v912, 0.0
        %v929 = vmax.f32 %v913, 0.0
        %v930 = vmax.f32 %v914, 0.0
        %v931 = vmax.f32 %v915, 0.0
        %v932 = vmax.f32 %v916, 0.0
        %v933 = vmax.f32 %v917, 0.0
        %v934 = vmax.f32 %v918, 0.0
        %v935 = vmax.f32 %v919, 0.0
        %v936 = vmax.f32 %v920, 0.0
        %v937 = vpack.c.bf16 %v922, %v921
        %v938 = vpack.c.bf16 %v924, %v923
        %v939 = vpack.c.bf16 %v926, %v925
        %v940 = vpack.c.bf16 %v928, %v927
        %v941 = vpack.c.bf16 %v930, %v929
        %v942 = vpack.c.bf16 %v932, %v931
        %v943 = vpack.c.bf16 %v934, %v933
        %v944 = vpack.c.bf16 %v936, %v935
        %945 = vrot.lane.b32.xlu0 %v475, 64
        %v946 = vpop.permute.xlu0 %945
        %947 = vrot.lane.b32.xlu0 %v476, 64
        %v948 = vpop.permute.xlu0 %947
        %949 = vrot.lane.b32.xlu0 %v477, 64
        %v950 = vpop.permute.xlu0 %949
        %951 = vrot.lane.b32.xlu0 %v478, 64
        %v952 = vpop.permute.xlu0 %951
        %953 = vrot.lane.b32.xlu0 %v479, 64
        %v954 = vpop.permute.xlu0 %953
        %955 = vrot.lane.b32.xlu0 %v480, 64
        %v956 = vpop.permute.xlu0 %955
        %957 = vrot.lane.b32.xlu0 %v481, 64
        %v958 = vpop.permute.xlu0 %957
        %959 = vrot.lane.b32.xlu0 %v482, 64
        %v960 = vpop.permute.xlu0 %959
        %v963 = vsel %vm619, %v937, %v946
        %v966 = vsel %vm619, %v938, %v948
        %v969 = vsel %vm619, %v939, %v950
        %v972 = vsel %vm619, %v940, %v952
        %v975 = vsel %vm619, %v941, %v954
        %v978 = vsel %vm619, %v942, %v956
        %v981 = vsel %vm619, %v943, %v958
        %v984 = vsel %vm619, %v944, %v960
        %v985 = vld [vmem:[%s5] sm:$0xf]
        %v986 = vld [vmem:[%s5 + $0x4] sm:$0xf]
        %v987 = vld [vmem:[%s5 + $0x8] sm:$0xf]
        %v988 = vld [vmem:[%s5 + $0xc] sm:$0xf]
        %v989 = vld [vmem:[%s5 + $0x10] sm:$0xf]
        %v990 = vld [vmem:[%s5 + $0x14] sm:$0xf]
        %v991 = vld [vmem:[%s5 + $0x18] sm:$0xf]
        %v992 = vld [vmem:[%s5 + $0x1c] sm:$0xf]
        %v993 = vld [vmem:[%s5 + $0x20] sm:$0xf]
        %v994 = vld [vmem:[%s5 + $0x24] sm:$0xf]
        %v995 = vld [vmem:[%s5 + $0x28] sm:$0xf]
        %v996 = vld [vmem:[%s5 + $0x2c] sm:$0xf]
        %v997 = vld [vmem:[%s6] sm:$0x1]
        %v999 = vlaneseq
        %v1000 = vshrl.u32 %v999, 7
        %v1001 = vsub.s32 0, %v1000
        %v1002 = vrot.slane %v997, %v1001
        %v1016 = vunpack.c.l.b16 %v985
        %v1017 = vunpack.c.l.b16 %v986
        %v1018 = vunpack.c.l.b16 %v987
        %v1019 = vunpack.c.l.b16 %v988
        %v1020 = vunpack.c.l.b16 %v989
        %v1021 = vunpack.c.l.b16 %v990
        %v1022 = vunpack.c.l.b16 %v991
        %v1023 = vunpack.c.l.b16 %v992
        %v1024 = vunpack.c.l.b16 %v993
        %v1025 = vunpack.c.l.b16 %v994
        %v1026 = vunpack.c.l.b16 %v995
        %v1027 = vunpack.c.l.b16 %v996
        %v1028 = vpack.c.b16 %v1017, %v1016
        %v1029 = vpack.c.b16 %v1019, %v1018
        %v1030 = vpack.c.b16 %v1021, %v1020
        %v1031 = vpack.c.b16 %v1023, %v1022
        %v1032 = vpack.c.b16 %v1025, %v1024
        %v1033 = vpack.c.b16 %v1027, %v1026
        %vm1040 = vcmask 785408
        %v1041 = vsel %vm1040, %v963, 0
        %v1043 = vsel %vm1040, %v966, 0
        %v1045 = vsel %vm1040, %v969, 0
        %v1047 = vsel %vm1040, %v972, 0
        %v1049 = vsel %vm1040, %v975, 0
        %v1051 = vsel %vm1040, %v978, 0
        %v1053 = vsel %vm1040, %v981, 0
        %v1055 = vsel %vm1040, %v984, 0
        %1057 = vmatprep.subr.bf16.mxu0 0
        %1058 = vmatpush1.bf16.msra.mxu0 %v1028
        %1059 = vmatprep.subr.bf16.mxu0 0
        %1060 = vmatpush1.bf16.msra.mxu0 %v1029
        %1061 = vmatprep.subr.bf16.mxu0 0
        %1062 = vmatpush1.bf16.msra.mxu0 %v1030
        %1063 = vmatprep.subr.bf16.mxu0 0
        %1064 = vmatpush1.bf16.msra.mxu0 %v1031
        %1065 = vmatprep.subr.bf16.mxu0 0
        %1066 = vmatpush1.bf16.msra.mxu0 %v1032
        %1067 = vmatprep.subr.bf16.mxu0 0
        %1068 = vmatpush1.bf16.msra.mxu0 %v1033
        %1069 = vmatprep.subr.bf16.mxu0 0
        %1070 = vmatpush1.bf16.msra.mxu0 0
        %1071 = vmatprep.subr.bf16.mxu0 0
        %1072 = vmatpush1.bf16.msra.mxu0 0
        %1073 = vmatprep.subr.bf16.mxu0 0
        %1074 = vmatpush1.bf16.msra.mxu0 0
        %1075 = vmatprep.subr.bf16.mxu0 0
        %1076 = vmatpush1.bf16.msra.mxu0 0
        %1077 = vmatprep.subr.bf16.mxu0 0
        %1078 = vmatpush1.bf16.msra.mxu0 0
        %1079 = vmatprep.subr.bf16.mxu0 0
        %1080 = vmatpush1.bf16.msra.mxu0 0
        %1081 = vmatprep.subr.bf16.mxu0 0
        %1082 = vmatpush1.bf16.msra.mxu0 0
        %1083 = vmatprep.subr.bf16.mxu0 0
        %1084 = vmatpush1.bf16.msra.mxu0 0
        %1085 = vmatprep.subr.bf16.mxu0 0
        %1086 = vmatpush1.bf16.msra.mxu0 0
        %1087 = vmatprep.subr.bf16.mxu0 0
        %1088 = vmatpush1.bf16.msra.mxu0 0
        %1089 = vmatprep.mubr.bf16.mxu0 0
        %1090 = vmatmul.mubr.bf16.gmra.mrb[0].mxu0 %v1041
        %v1091 = vpop.f32.mrb[0].mxu0
        %v1092 = vadd.f32 %v1002, %v1091
        %v1093 = vpop.f32.mrb[0].mxu0
        %v1094 = vpop.f32.mrb[0].mxu0
        %v1095 = vadd.f32 %v1002, %v1094
        %v1096 = vpop.f32.mrb[0].mxu0
        %1097 = vmatprep.mubr.bf16.mxu0 0
        %1098 = vmatmul.mubr.bf16.gmra.mrb[0].mxu0 %v1043
        %v1099 = vpop.f32.mrb[0].mxu0
        %v1100 = vadd.f32 %v1002, %v1099
        %v1101 = vpop.f32.mrb[0].mxu0
        %v1102 = vpop.f32.mrb[0].mxu0
        %v1103 = vadd.f32 %v1002, %v1102
        %v1104 = vpop.f32.mrb[0].mxu0
        %1105 = vmatprep.mubr.bf16.mxu0 0
        %1106 = vmatmul.mubr.bf16.gmra.mrb[0].mxu0 %v1045
        %v1107 = vpop.f32.mrb[0].mxu0
        %v1108 = vadd.f32 %v1002, %v1107
        %v1109 = vpop.f32.mrb[0].mxu0
        %v1110 = vpop.f32.mrb[0].mxu0
        %v1111 = vadd.f32 %v1002, %v1110
        %v1112 = vpop.f32.mrb[0].mxu0
        %1113 = vmatprep.mubr.bf16.mxu0 0
        %1114 = vmatmul.mubr.bf16.gmra.mrb[0].mxu0 %v1047
        %v1115 = vpop.f32.mrb[0].mxu0
        %v1116 = vadd.f32 %v1002, %v1115
        %v1117 = vpop.f32.mrb[0].mxu0
        %v1118 = vpop.f32.mrb[0].mxu0
        %v1119 = vadd.f32 %v1002, %v1118
        %v1120 = vpop.f32.mrb[0].mxu0
        %1121 = vmatprep.mubr.bf16.mxu0 0
        %1122 = vmatmul.mubr.bf16.gmra.mrb[0].mxu0 %v1049
        %v1123 = vpop.f32.mrb[0].mxu0
        %v1124 = vadd.f32 %v1002, %v1123
        %v1125 = vpop.f32.mrb[0].mxu0
        %v1126 = vpop.f32.mrb[0].mxu0
        %v1127 = vadd.f32 %v1002, %v1126
        %v1128 = vpop.f32.mrb[0].mxu0
        %1129 = vmatprep.mubr.bf16.mxu0 0
        %1130 = vmatmul.mubr.bf16.gmra.mrb[0].mxu0 %v1051
        %v1131 = vpop.f32.mrb[0].mxu0
        %v1132 = vadd.f32 %v1002, %v1131
        %v1133 = vpop.f32.mrb[0].mxu0
        %v1134 = vpop.f32.mrb[0].mxu0
        %v1135 = vadd.f32 %v1002, %v1134
        %v1136 = vpop.f32.mrb[0].mxu0
        %1137 = vmatprep.mubr.bf16.mxu0 0
        %1138 = vmatmul.mubr.bf16.gmra.mrb[0].mxu0 %v1053
        %v1139 = vpop.f32.mrb[0].mxu0
        %v1140 = vadd.f32 %v1002, %v1139
        %v1141 = vpop.f32.mrb[0].mxu0
        %v1142 = vpop.f32.mrb[0].mxu0
        %v1143 = vadd.f32 %v1002, %v1142
        %v1144 = vpop.f32.mrb[0].mxu0
        %1145 = vmatprep.mubr.bf16.mxu0 0
        %1146 = vmatmul.mubr.bf16.gmra.mrb[0].mxu0 %v1055
        %v1147 = vpop.f32.mrb[0].mxu0
        %v1148 = vadd.f32 %v1002, %v1147
        %v1149 = vpop.f32.mrb[0].mxu0
        %v1150 = vpop.f32.mrb[0].mxu0
        %v1151 = vadd.f32 %v1002, %v1150
        %v1152 = vpop.f32.mrb[0].mxu0
        %1153 = vdwg.mxu0
        %v1154 = vld [vmem:[%s7] sm:$0x1]
        %v1155 = vld [vmem:[%s8] sm:$0x1]
        %v1156 = vsel %vm619, %v1092, 0.0
        %1157 = vadd.xlane.f32.xlu0 %v1156
        %v1158 = vpop.xlane.xlu0 %1157
        %v1159 = vsel %vm619, %v1095, 0.0
        %1160 = vadd.xlane.f32.xlu0 %v1159
        %v1161 = vpop.xlane.xlu0 %1160
        %v1162 = vsel %vm619, %v1100, 0.0
        %1163 = vadd.xlane.f32.xlu0 %v1162
        %v1164 = vpop.xlane.xlu0 %1163
        %v1165 = vsel %vm619, %v1103, 0.0
        %1166 = vadd.xlane.f32.xlu0 %v1165
        %v1167 = vpop.xlane.xlu0 %1166
        %v1168 = vsel %vm619, %v1108, 0.0
        %1169 = vadd.xlane.f32.xlu0 %v1168
        %v1170 = vpop.xlane.xlu0 %1169
        %v1171 = vsel %vm619, %v1111, 0.0
        %1172 = vadd.xlane.f32.xlu0 %v1171
        %v1173 = vpop.xlane.xlu0 %1172
        %v1174 = vsel %vm619, %v1116, 0.0
        %1175 = vadd.xlane.f32.xlu0 %v1174
        %v1176 = vpop.xlane.xlu0 %1175
        %v1177 = vsel %vm619, %v1119, 0.0
        %1178 = vadd.xlane.f32.xlu0 %v1177
        %v1179 = vpop.xlane.xlu0 %1178
        %v1180 = vsel %vm619, %v1124, 0.0
        %1181 = vadd.xlane.f32.xlu0 %v1180
        %v1182 = vpop.xlane.xlu0 %1181
        %v1183 = vsel %vm619, %v1127, 0.0
        %1184 = vadd.xlane.f32.xlu0 %v1183
        %v1185 = vpop.xlane.xlu0 %1184
        %v1186 = vsel %vm619, %v1132, 0.0
        %1187 = vadd.xlane.f32.xlu0 %v1186
        %v1188 = vpop.xlane.xlu0 %1187
        %v1189 = vsel %vm619, %v1135, 0.0
        %1190 = vadd.xlane.f32.xlu0 %v1189
        %v1191 = vpop.xlane.xlu0 %1190
        %v1192 = vsel %vm619, %v1140, 0.0
        %1193 = vadd.xlane.f32.xlu0 %v1192
        %v1194 = vpop.xlane.xlu0 %1193
        %v1195 = vsel %vm619, %v1143, 0.0
        %1196 = vadd.xlane.f32.xlu0 %v1195
        %v1197 = vpop.xlane.xlu0 %1196
        %v1198 = vsel %vm619, %v1148, 0.0
        %1199 = vadd.xlane.f32.xlu0 %v1198
        %v1200 = vpop.xlane.xlu0 %1199
        %v1201 = vsel %vm619, %v1151, 0.0
        %1202 = vadd.xlane.f32.xlu0 %v1201
        %v1203 = vpop.xlane.xlu0 %1202
        %v1204 = vmul.f32 %v1158, %v668
        %v1205 = vmul.f32 %v1161, %v668
        %v1206 = vmul.f32 %v1164, %v668
        %v1207 = vmul.f32 %v1167, %v668
        %v1208 = vmul.f32 %v1170, %v668
        %v1209 = vmul.f32 %v1173, %v668
        %v1210 = vmul.f32 %v1176, %v668
        %v1211 = vmul.f32 %v1179, %v668
        %v1212 = vmul.f32 %v1182, %v668
        %v1213 = vmul.f32 %v1185, %v668
        %v1214 = vmul.f32 %v1188, %v668
        %v1215 = vmul.f32 %v1191, %v668
        %v1216 = vmul.f32 %v1194, %v668
        %v1217 = vmul.f32 %v1197, %v668
        %v1218 = vmul.f32 %v1200, %v668
        %v1219 = vmul.f32 %v1203, %v668
        %v1220 = vmul.f32 %v1092, %v1092
        %v1221 = vmul.f32 %v1095, %v1095
        %v1222 = vmul.f32 %v1100, %v1100
        %v1223 = vmul.f32 %v1103, %v1103
        %v1224 = vmul.f32 %v1108, %v1108
        %v1225 = vmul.f32 %v1111, %v1111
        %v1226 = vmul.f32 %v1116, %v1116
        %v1227 = vmul.f32 %v1119, %v1119
        %v1228 = vmul.f32 %v1124, %v1124
        %v1229 = vmul.f32 %v1127, %v1127
        %v1230 = vmul.f32 %v1132, %v1132
        %v1231 = vmul.f32 %v1135, %v1135
        %v1232 = vmul.f32 %v1140, %v1140
        %v1233 = vmul.f32 %v1143, %v1143
        %v1234 = vmul.f32 %v1148, %v1148
        %v1235 = vmul.f32 %v1151, %v1151
        %v1236 = vsel %vm619, %v1220, 0.0
        %1237 = vadd.xlane.f32.xlu0 %v1236
        %v1238 = vpop.xlane.xlu0 %1237
        %v1239 = vsel %vm619, %v1221, 0.0
        %1240 = vadd.xlane.f32.xlu0 %v1239
        %v1241 = vpop.xlane.xlu0 %1240
        %v1242 = vsel %vm619, %v1222, 0.0
        %1243 = vadd.xlane.f32.xlu0 %v1242
        %v1244 = vpop.xlane.xlu0 %1243
        %v1245 = vsel %vm619, %v1223, 0.0
        %1246 = vadd.xlane.f32.xlu0 %v1245
        %v1247 = vpop.xlane.xlu0 %1246
        %v1248 = vsel %vm619, %v1224, 0.0
        %1249 = vadd.xlane.f32.xlu0 %v1248
        %v1250 = vpop.xlane.xlu0 %1249
        %v1251 = vsel %vm619, %v1225, 0.0
        %1252 = vadd.xlane.f32.xlu0 %v1251
        %v1253 = vpop.xlane.xlu0 %1252
        %v1254 = vsel %vm619, %v1226, 0.0
        %1255 = vadd.xlane.f32.xlu0 %v1254
        %v1256 = vpop.xlane.xlu0 %1255
        %v1257 = vsel %vm619, %v1227, 0.0
        %1258 = vadd.xlane.f32.xlu0 %v1257
        %v1259 = vpop.xlane.xlu0 %1258
        %v1260 = vsel %vm619, %v1228, 0.0
        %1261 = vadd.xlane.f32.xlu0 %v1260
        %v1262 = vpop.xlane.xlu0 %1261
        %v1263 = vsel %vm619, %v1229, 0.0
        %1264 = vadd.xlane.f32.xlu0 %v1263
        %v1265 = vpop.xlane.xlu0 %1264
        %v1266 = vsel %vm619, %v1230, 0.0
        %1267 = vadd.xlane.f32.xlu0 %v1266
        %v1268 = vpop.xlane.xlu0 %1267
        %v1269 = vsel %vm619, %v1231, 0.0
        %1270 = vadd.xlane.f32.xlu0 %v1269
        %v1271 = vpop.xlane.xlu0 %1270
        %v1272 = vsel %vm619, %v1232, 0.0
        %1273 = vadd.xlane.f32.xlu0 %v1272
        %v1274 = vpop.xlane.xlu0 %1273
        %v1275 = vsel %vm619, %v1233, 0.0
        %1276 = vadd.xlane.f32.xlu0 %v1275
        %v1277 = vpop.xlane.xlu0 %1276
        %v1278 = vsel %vm619, %v1234, 0.0
        %1279 = vadd.xlane.f32.xlu0 %v1278
        %v1280 = vpop.xlane.xlu0 %1279
        %v1281 = vsel %vm619, %v1235, 0.0
        %1282 = vadd.xlane.f32.xlu0 %v1281
        %v1283 = vpop.xlane.xlu0 %1282
        %v1284 = vmul.f32 %v1238, %v668
        %v1285 = vmul.f32 %v1241, %v668
        %v1286 = vmul.f32 %v1244, %v668
        %v1287 = vmul.f32 %v1247, %v668
        %v1288 = vmul.f32 %v1250, %v668
        %v1289 = vmul.f32 %v1253, %v668
        %v1290 = vmul.f32 %v1256, %v668
        %v1291 = vmul.f32 %v1259, %v668
        %v1292 = vmul.f32 %v1262, %v668
        %v1293 = vmul.f32 %v1265, %v668
        %v1294 = vmul.f32 %v1268, %v668
        %v1295 = vmul.f32 %v1271, %v668
        %v1296 = vmul.f32 %v1274, %v668
        %v1297 = vmul.f32 %v1277, %v668
        %v1298 = vmul.f32 %v1280, %v668
        %v1299 = vmul.f32 %v1283, %v668
        %v1300 = vmul.f32 %v1204, %v1204
        %v1301 = vmul.f32 %v1205, %v1205
        %v1302 = vmul.f32 %v1206, %v1206
        %v1303 = vmul.f32 %v1207, %v1207
        %v1304 = vmul.f32 %v1208, %v1208
        %v1305 = vmul.f32 %v1209, %v1209
        %v1306 = vmul.f32 %v1210, %v1210
        %v1307 = vmul.f32 %v1211, %v1211
        %v1308 = vmul.f32 %v1212, %v1212
        %v1309 = vmul.f32 %v1213, %v1213
        %v1310 = vmul.f32 %v1214, %v1214
        %v1311 = vmul.f32 %v1215, %v1215
        %v1312 = vmul.f32 %v1216, %v1216
        %v1313 = vmul.f32 %v1217, %v1217
        %v1314 = vmul.f32 %v1218, %v1218
        %v1315 = vmul.f32 %v1219, %v1219
        %v1316 = vsub.f32 %v1284, %v1300
        %v1317 = vsub.f32 %v1285, %v1301
        %v1318 = vsub.f32 %v1286, %v1302
        %v1319 = vsub.f32 %v1287, %v1303
        %v1320 = vsub.f32 %v1288, %v1304
        %v1321 = vsub.f32 %v1289, %v1305
        %v1322 = vsub.f32 %v1290, %v1306
        %v1323 = vsub.f32 %v1291, %v1307
        %v1324 = vsub.f32 %v1292, %v1308
        %v1325 = vsub.f32 %v1293, %v1309
        %v1326 = vsub.f32 %v1294, %v1310
        %v1327 = vsub.f32 %v1295, %v1311
        %v1328 = vsub.f32 %v1296, %v1312
        %v1329 = vsub.f32 %v1297, %v1313
        %v1330 = vsub.f32 %v1298, %v1314
        %v1331 = vsub.f32 %v1299, %v1315
        %v1332 = vmax.f32 %v1316, 0.0
        %v1333 = vmax.f32 %v1317, 0.0
        %v1334 = vmax.f32 %v1318, 0.0
        %v1335 = vmax.f32 %v1319, 0.0
        %v1336 = vmax.f32 %v1320, 0.0
        %v1337 = vmax.f32 %v1321, 0.0
        %v1338 = vmax.f32 %v1322, 0.0
        %v1339 = vmax.f32 %v1323, 0.0
        %v1340 = vmax.f32 %v1324, 0.0
        %v1341 = vmax.f32 %v1325, 0.0
        %v1342 = vmax.f32 %v1326, 0.0
        %v1343 = vmax.f32 %v1327, 0.0
        %v1344 = vmax.f32 %v1328, 0.0
        %v1345 = vmax.f32 %v1329, 0.0
        %v1346 = vmax.f32 %v1330, 0.0
        %v1347 = vmax.f32 %v1331, 0.0
        %v1348 = vsub.f32 %v1092, %v1204
        %v1349 = vsub.f32 %v1095, %v1205
        %v1350 = vsub.f32 %v1100, %v1206
        %v1351 = vsub.f32 %v1103, %v1207
        %v1352 = vsub.f32 %v1108, %v1208
        %v1353 = vsub.f32 %v1111, %v1209
        %v1354 = vsub.f32 %v1116, %v1210
        %v1355 = vsub.f32 %v1119, %v1211
        %v1356 = vsub.f32 %v1124, %v1212
        %v1357 = vsub.f32 %v1127, %v1213
        %v1358 = vsub.f32 %v1132, %v1214
        %v1359 = vsub.f32 %v1135, %v1215
        %v1360 = vsub.f32 %v1140, %v1216
        %v1361 = vsub.f32 %v1143, %v1217
        %v1362 = vsub.f32 %v1148, %v1218
        %v1363 = vsub.f32 %v1151, %v1219
        %v1364 = vadd.f32 %v1332, 1e-05
        %v1365 = vadd.f32 %v1333, 1e-05
        %v1366 = vadd.f32 %v1334, 1e-05
        %v1367 = vadd.f32 %v1335, 1e-05
        %v1368 = vadd.f32 %v1336, 1e-05
        %v1369 = vadd.f32 %v1337, 1e-05
        %v1370 = vadd.f32 %v1338, 1e-05
        %v1371 = vadd.f32 %v1339, 1e-05
        %v1372 = vadd.f32 %v1340, 1e-05
        %v1373 = vadd.f32 %v1341, 1e-05
        %v1374 = vadd.f32 %v1342, 1e-05
        %v1375 = vadd.f32 %v1343, 1e-05
        %v1376 = vadd.f32 %v1344, 1e-05
        %v1377 = vadd.f32 %v1345, 1e-05
        %v1378 = vadd.f32 %v1346, 1e-05
        %v1379 = vadd.f32 %v1347, 1e-05
        %v1380 = vrsqrt.pop %v1364
        %v1381 = vrsqrt.pop %v1365
        %v1382 = vrsqrt.pop %v1366
        %v1383 = vrsqrt.pop %v1367
        %v1384 = vrsqrt.pop %v1368
        %v1385 = vrsqrt.pop %v1369
        %v1386 = vrsqrt.pop %v1370
        %v1387 = vrsqrt.pop %v1371
        %v1388 = vrsqrt.pop %v1372
        %v1389 = vrsqrt.pop %v1373
        %v1390 = vrsqrt.pop %v1374
        %v1391 = vrsqrt.pop %v1375
        %v1392 = vrsqrt.pop %v1376
        %v1393 = vrsqrt.pop %v1377
        %v1394 = vrsqrt.pop %v1378
        %v1395 = vrsqrt.pop %v1379
        %v1396 = vmul.f32 %v1348, %v1380
        %v1397 = vmul.f32 %v1349, %v1381
        %v1398 = vmul.f32 %v1350, %v1382
        %v1399 = vmul.f32 %v1351, %v1383
        %v1400 = vmul.f32 %v1352, %v1384
        %v1401 = vmul.f32 %v1353, %v1385
        %v1402 = vmul.f32 %v1354, %v1386
        %v1403 = vmul.f32 %v1355, %v1387
        %v1404 = vmul.f32 %v1356, %v1388
        %v1405 = vmul.f32 %v1357, %v1389
        %v1406 = vmul.f32 %v1358, %v1390
        %v1407 = vmul.f32 %v1359, %v1391
        %v1408 = vmul.f32 %v1360, %v1392
        %v1409 = vmul.f32 %v1361, %v1393
        %v1410 = vmul.f32 %v1362, %v1394
        %v1411 = vmul.f32 %v1363, %v1395
        %v1413 = vlaneseq
        %v1414 = vshrl.u32 %v1413, 7
        %v1415 = vsub.s32 0, %v1414
        %v1416 = vrot.slane %v1154, %v1415
        %v1418 = vmul.f32 %v1396, %v1416
        %v1419 = vmul.f32 %v1397, %v1416
        %v1420 = vmul.f32 %v1398, %v1416
        %v1421 = vmul.f32 %v1399, %v1416
        %v1422 = vmul.f32 %v1400, %v1416
        %v1423 = vmul.f32 %v1401, %v1416
        %v1424 = vmul.f32 %v1402, %v1416
        %v1425 = vmul.f32 %v1403, %v1416
        %v1426 = vmul.f32 %v1404, %v1416
        %v1427 = vmul.f32 %v1405, %v1416
        %v1428 = vmul.f32 %v1406, %v1416
        %v1429 = vmul.f32 %v1407, %v1416
        %v1430 = vmul.f32 %v1408, %v1416
        %v1431 = vmul.f32 %v1409, %v1416
        %v1432 = vmul.f32 %v1410, %v1416
        %v1433 = vmul.f32 %v1411, %v1416
        %v1435 = vlaneseq
        %v1436 = vshrl.u32 %v1435, 7
        %v1437 = vsub.s32 0, %v1436
        %v1438 = vrot.slane %v1155, %v1437
        %v1440 = vadd.f32 %v1418, %v1438
        %v1441 = vadd.f32 %v1419, %v1438
        %v1442 = vadd.f32 %v1420, %v1438
        %v1443 = vadd.f32 %v1421, %v1438
        %v1444 = vadd.f32 %v1422, %v1438
        %v1445 = vadd.f32 %v1423, %v1438
        %v1446 = vadd.f32 %v1424, %v1438
        %v1447 = vadd.f32 %v1425, %v1438
        %v1448 = vadd.f32 %v1426, %v1438
        %v1449 = vadd.f32 %v1427, %v1438
        %v1450 = vadd.f32 %v1428, %v1438
        %v1451 = vadd.f32 %v1429, %v1438
        %v1452 = vadd.f32 %v1430, %v1438
        %v1453 = vadd.f32 %v1431, %v1438
        %v1454 = vadd.f32 %v1432, %v1438
        %v1455 = vadd.f32 %v1433, %v1438
        %v1456 = vmax.f32 %v1440, 0.0
        %v1457 = vmax.f32 %v1441, 0.0
        %v1458 = vmax.f32 %v1442, 0.0
        %v1459 = vmax.f32 %v1443, 0.0
        %v1460 = vmax.f32 %v1444, 0.0
        %v1461 = vmax.f32 %v1445, 0.0
        %v1462 = vmax.f32 %v1446, 0.0
        %v1463 = vmax.f32 %v1447, 0.0
        %v1464 = vmax.f32 %v1448, 0.0
        %v1465 = vmax.f32 %v1449, 0.0
        %v1466 = vmax.f32 %v1450, 0.0
        %v1467 = vmax.f32 %v1451, 0.0
        %v1468 = vmax.f32 %v1452, 0.0
        %v1469 = vmax.f32 %v1453, 0.0
        %v1470 = vmax.f32 %v1454, 0.0
        %v1471 = vmax.f32 %v1455, 0.0
        %v1472 = vpack.c.bf16 %v1457, %v1456
        %v1473 = vpack.c.bf16 %v1459, %v1458
        %v1474 = vpack.c.bf16 %v1461, %v1460
        %v1475 = vpack.c.bf16 %v1463, %v1462
        %v1476 = vpack.c.bf16 %v1465, %v1464
        %v1477 = vpack.c.bf16 %v1467, %v1466
        %v1478 = vpack.c.bf16 %v1469, %v1468
        %v1479 = vpack.c.bf16 %v1471, %v1470
        %1488 = vrot.lane.b32.xlu0 %v963, 64
        %v1489 = vpop.permute.xlu0 %1488
        %1490 = vrot.lane.b32.xlu0 %v966, 64
        %v1491 = vpop.permute.xlu0 %1490
        %1492 = vrot.lane.b32.xlu0 %v969, 64
        %v1493 = vpop.permute.xlu0 %1492
        %1494 = vrot.lane.b32.xlu0 %v972, 64
        %v1495 = vpop.permute.xlu0 %1494
        %1496 = vrot.lane.b32.xlu0 %v975, 64
        %v1497 = vpop.permute.xlu0 %1496
        %1498 = vrot.lane.b32.xlu0 %v978, 64
        %v1499 = vpop.permute.xlu0 %1498
        %1500 = vrot.lane.b32.xlu0 %v981, 64
        %v1501 = vpop.permute.xlu0 %1500
        %1502 = vrot.lane.b32.xlu0 %v984, 64
        %v1503 = vpop.permute.xlu0 %1502
        %v1506 = vsel %vm619, %v1472, %v1489
        %v1510 = vsel %vm619, %v1473, %v1491
        %v1514 = vsel %vm619, %v1474, %v1493
        %v1518 = vsel %vm619, %v1475, %v1495
        %v1522 = vsel %vm619, %v1476, %v1497
        %v1526 = vsel %vm619, %v1477, %v1499
        %v1530 = vsel %vm619, %v1478, %v1501
        %v1534 = vsel %vm619, %v1479, %v1503
        %v1536 = vld [vmem:[%s9] sm:$0xf]
        %v1537 = vld [vmem:[%s9 + $0x4] sm:$0xf]
        %v1538 = vld [vmem:[%s9 + $0x8] sm:$0xf]
        %v1539 = vld [vmem:[%s9 + $0xc] sm:$0xf]
        %v1540 = vld [vmem:[%s9 + $0x10] sm:$0xf]
        %v1541 = vld [vmem:[%s9 + $0x14] sm:$0xf]
        %v1542 = vld [vmem:[%s9 + $0x18] sm:$0xf]
        %v1543 = vld [vmem:[%s9 + $0x1c] sm:$0xf]
        %v1544 = vld [vmem:[%s9 + $0x20] sm:$0xf]
        %v1545 = vld [vmem:[%s9 + $0x24] sm:$0xf]
        %v1546 = vld [vmem:[%s9 + $0x28] sm:$0xf]
        %v1547 = vld [vmem:[%s9 + $0x2c] sm:$0xf]
        %v1548 = vld [vmem:[%s9 + $0x30] sm:$0xf]
        %v1549 = vld [vmem:[%s9 + $0x34] sm:$0xf]
        %v1550 = vld [vmem:[%s9 + $0x38] sm:$0xf]
        %v1551 = vld [vmem:[%s9 + $0x3c] sm:$0xf]
        %v1552 = vld [vmem:[%s9 + $0x40] sm:$0xf]
        %v1553 = vld [vmem:[%s9 + $0x44] sm:$0xf]
        %v1554 = vld [vmem:[%s9 + $0x48] sm:$0xf]
        %v1555 = vld [vmem:[%s9 + $0x4c] sm:$0xf]
        %v1556 = vld [vmem:[%s10] sm:$0x1]
        %v1558 = vlaneseq
        %v1559 = vshrl.u32 %v1558, 7
        %v1560 = vsub.s32 0, %v1559
        %v1561 = vrot.slane %v1556, %v1560
        %v1583 = vunpack.c.l.b16 %v1536
        %v1584 = vunpack.c.l.b16 %v1537
        %v1585 = vunpack.c.l.b16 %v1538
        %v1586 = vunpack.c.l.b16 %v1539
        %v1587 = vunpack.c.l.b16 %v1540
        %v1588 = vunpack.c.l.b16 %v1541
        %v1589 = vunpack.c.l.b16 %v1542
        %v1590 = vunpack.c.l.b16 %v1543
        %v1591 = vunpack.c.l.b16 %v1544
        %v1592 = vunpack.c.l.b16 %v1545
        %v1593 = vunpack.c.l.b16 %v1546
        %v1594 = vunpack.c.l.b16 %v1547
        %v1595 = vunpack.c.l.b16 %v1548
        %v1596 = vunpack.c.l.b16 %v1549
        %v1597 = vunpack.c.l.b16 %v1550
        %v1598 = vunpack.c.l.b16 %v1551
        %v1599 = vunpack.c.l.b16 %v1552
        %v1600 = vunpack.c.l.b16 %v1553
        %v1601 = vunpack.c.l.b16 %v1554
        %v1602 = vunpack.c.l.b16 %v1555
        %v1603 = vpack.c.b16 %v1584, %v1583
        %v1604 = vpack.c.b16 %v1586, %v1585
        %v1605 = vpack.c.b16 %v1588, %v1587
        %v1606 = vpack.c.b16 %v1590, %v1589
        %v1607 = vpack.c.b16 %v1592, %v1591
        %v1608 = vpack.c.b16 %v1594, %v1593
        %v1609 = vpack.c.b16 %v1596, %v1595
        %v1610 = vpack.c.b16 %v1598, %v1597
        %v1611 = vpack.c.b16 %v1600, %v1599
        %v1612 = vpack.c.b16 %v1602, %v1601
        %v1623 = vsel %vm495, %v1489, 0
        %v1625 = vsel %vm495, %v1491, 0
        %v1627 = vsel %vm495, %v1493, 0
        %v1629 = vsel %vm495, %v1495, 0
        %v1631 = vsel %vm495, %v1497, 0
        %v1633 = vsel %vm495, %v1499, 0
        %v1635 = vsel %vm495, %v1501, 0
        %v1637 = vsel %vm495, %v1503, 0
        %1639 = vmatprep.subr.bf16.mxu0 0
        %1640 = vmatpush1.bf16.msra.mxu0 %v1603
        %1641 = vmatprep.subr.bf16.mxu0 0
        %1642 = vmatpush1.bf16.msra.mxu0 %v1604
        %1643 = vmatprep.subr.bf16.mxu0 0
        %1644 = vmatpush1.bf16.msra.mxu0 %v1605
        %1645 = vmatprep.subr.bf16.mxu0 0
        %1646 = vmatpush1.bf16.msra.mxu0 %v1606
        %1647 = vmatprep.subr.bf16.mxu0 0
        %1648 = vmatpush1.bf16.msra.mxu0 %v1607
        %1649 = vmatprep.subr.bf16.mxu0 0
        %1650 = vmatpush1.bf16.msra.mxu0 %v1608
        %1651 = vmatprep.subr.bf16.mxu0 0
        %1652 = vmatpush1.bf16.msra.mxu0 %v1609
        %1653 = vmatprep.subr.bf16.mxu0 0
        %1654 = vmatpush1.bf16.msra.mxu0 %v1610
        %1655 = vmatprep.subr.bf16.mxu0 0
        %1656 = vmatpush1.bf16.msra.mxu0 %v1611
        %1657 = vmatprep.subr.bf16.mxu0 0
        %1658 = vmatpush1.bf16.msra.mxu0 %v1612
        %1659 = vmatprep.subr.bf16.mxu0 0
        %1660 = vmatpush1.bf16.msra.mxu0 0
        %1661 = vmatprep.subr.bf16.mxu0 0
        %1662 = vmatpush1.bf16.msra.mxu0 0
        %1663 = vmatprep.subr.bf16.mxu0 0
        %1664 = vmatpush1.bf16.msra.mxu0 0
        %1665 = vmatprep.subr.bf16.mxu0 0
        %1666 = vmatpush1.bf16.msra.mxu0 0
        %1667 = vmatprep.subr.bf16.mxu0 0
        %1668 = vmatpush1.bf16.msra.mxu0 0
        %1669 = vmatprep.subr.bf16.mxu0 0
        %1670 = vmatpush1.bf16.msra.mxu0 0
        %1671 = vmatprep.mubr.bf16.mxu0 %v1623
        %1672 = vmatmul.mubr.bf16.gmra.mrb[0].mxu0 %v1506
        %v1673 = vpop.f32.mrb[0].mxu0
        %v1674 = vadd.f32 %v1561, %v1673
        %v1675 = vpop.f32.mrb[0].mxu0
        %v1676 = vpop.f32.mrb[0].mxu0
        %v1677 = vadd.f32 %v1561, %v1676
        %v1678 = vpop.f32.mrb[0].mxu0
        %1679 = vmatprep.mubr.bf16.mxu0 %v1625
        %1680 = vmatmul.mubr.bf16.gmra.mrb[0].mxu0 %v1510
        %v1681 = vpop.f32.mrb[0].mxu0
        %v1682 = vadd.f32 %v1561, %v1681
        %v1683 = vpop.f32.mrb[0].mxu0
        %v1684 = vpop.f32.mrb[0].mxu0
        %v1685 = vadd.f32 %v1561, %v1684
        %v1686 = vpop.f32.mrb[0].mxu0
        %1687 = vmatprep.mubr.bf16.mxu0 %v1627
        %1688 = vmatmul.mubr.bf16.gmra.mrb[0].mxu0 %v1514
        %v1689 = vpop.f32.mrb[0].mxu0
        %v1690 = vadd.f32 %v1561, %v1689
        %v1691 = vpop.f32.mrb[0].mxu0
        %v1692 = vpop.f32.mrb[0].mxu0
        %v1693 = vadd.f32 %v1561, %v1692
        %v1694 = vpop.f32.mrb[0].mxu0
        %1695 = vmatprep.mubr.bf16.mxu0 %v1629
        %1696 = vmatmul.mubr.bf16.gmra.mrb[0].mxu0 %v1518
        %v1697 = vpop.f32.mrb[0].mxu0
        %v1698 = vadd.f32 %v1561, %v1697
        %v1699 = vpop.f32.mrb[0].mxu0
        %v1700 = vpop.f32.mrb[0].mxu0
        %v1701 = vadd.f32 %v1561, %v1700
        %v1702 = vpop.f32.mrb[0].mxu0
        %1703 = vmatprep.mubr.bf16.mxu0 %v1631
        %1704 = vmatmul.mubr.bf16.gmra.mrb[0].mxu0 %v1522
        %v1705 = vpop.f32.mrb[0].mxu0
        %v1706 = vadd.f32 %v1561, %v1705
        %v1707 = vpop.f32.mrb[0].mxu0
        %v1708 = vpop.f32.mrb[0].mxu0
        %v1709 = vadd.f32 %v1561, %v1708
        %v1710 = vpop.f32.mrb[0].mxu0
        %1711 = vmatprep.mubr.bf16.mxu0 %v1633
        %1712 = vmatmul.mubr.bf16.gmra.mrb[0].mxu0 %v1526
        %v1713 = vpop.f32.mrb[0].mxu0
        %v1714 = vadd.f32 %v1561, %v1713
        %v1715 = vpop.f32.mrb[0].mxu0
        %v1716 = vpop.f32.mrb[0].mxu0
        %v1717 = vadd.f32 %v1561, %v1716
        %v1718 = vpop.f32.mrb[0].mxu0
        %1719 = vmatprep.mubr.bf16.mxu0 %v1635
        %1720 = vmatmul.mubr.bf16.gmra.mrb[0].mxu0 %v1530
        %v1721 = vpop.f32.mrb[0].mxu0
        %v1722 = vadd.f32 %v1561, %v1721
        %v1723 = vpop.f32.mrb[0].mxu0
        %v1724 = vpop.f32.mrb[0].mxu0
        %v1725 = vadd.f32 %v1561, %v1724
        %v1726 = vpop.f32.mrb[0].mxu0
        %1727 = vmatprep.mubr.bf16.mxu0 %v1637
        %1728 = vmatmul.mubr.bf16.gmra.mrb[0].mxu0 %v1534
        %v1729 = vpop.f32.mrb[0].mxu0
        %v1730 = vadd.f32 %v1561, %v1729
        %v1731 = vpop.f32.mrb[0].mxu0
        %v1732 = vpop.f32.mrb[0].mxu0
        %v1733 = vadd.f32 %v1561, %v1732
        %v1734 = vpop.f32.mrb[0].mxu0
        %1735 = vdwg.mxu0
        %v1736 = vld [vmem:[%s11] sm:$0x7]
        %v1737 = vpack.c.bf16 %v1736, %v1736
        %vm1738 = vcmask 1042432
        %v1739 = vsel %vm1738, %v1736, 0.0
        %v1740 = vrot.slane %v1739, 4
        %v1741 = vadd.f32 %v1739, %v1740
        %v1742 = vrot.slane %v1741, 2
        %v1743 = vadd.f32 %v1741, %v1742
        %v1744 = vrot.slane %v1743, 1
        %v1745 = vadd.f32 %v1743, %v1744
        %vm1746 = vcmp.gt.f32.partialorder %v1745, 0.0
        %vm1747 = vcmp.gt.f32.partialorder %v1736, 0.0
        %v1748 = vsel %vm1747, 1, 0
        %v1749 = vlaneseq
        %v1750 = vshrl.u32 %v1749, 7
        %v1751 = vsub.s32 0, %v1750
        %v1752 = vrot.slane %v1748, %v1751
        %vm1753 = vcmp.eq.s32.totalorder %v1752, 1
        %v1754 = vsel %vm1753, %v1674, -1e+30
        %v1755 = vsel %vm1753, %v1677, -1e+30
        %v1756 = vsel %vm1753, %v1682, -1e+30
        %v1757 = vsel %vm1753, %v1685, -1e+30
        %v1758 = vsel %vm1753, %v1690, -1e+30
        %v1759 = vsel %vm1753, %v1693, -1e+30
        %v1760 = vsel %vm1753, %v1698, -1e+30
        %v1761 = vsel %vm1753, %v1701, -1e+30
        %v1762 = vsel %vm1753, %v1706, -1e+30
        %v1763 = vsel %vm1753, %v1709, -1e+30
        %v1764 = vsel %vm1753, %v1714, -1e+30
        %v1765 = vsel %vm1753, %v1717, -1e+30
        %v1766 = vsel %vm1753, %v1722, -1e+30
        %v1767 = vsel %vm1753, %v1725, -1e+30
        %v1768 = vsel %vm1753, %v1730, -1e+30
        %v1769 = vsel %vm1753, %v1733, -1e+30
        %1770 = vmax.xlane.f32.xlu0 %v1754
        %v1771 = vpop.xlane.xlu0 %1770
        %1772 = vmax.xlane.f32.xlu0 %v1755
        %v1773 = vpop.xlane.xlu0 %1772
        %1774 = vmax.xlane.f32.xlu0 %v1756
        %v1775 = vpop.xlane.xlu0 %1774
        %1776 = vmax.xlane.f32.xlu0 %v1757
        %v1777 = vpop.xlane.xlu0 %1776
        %1778 = vmax.xlane.f32.xlu0 %v1758
        %v1779 = vpop.xlane.xlu0 %1778
        %1780 = vmax.xlane.f32.xlu0 %v1759
        %v1781 = vpop.xlane.xlu0 %1780
        %1782 = vmax.xlane.f32.xlu0 %v1760
        %v1783 = vpop.xlane.xlu0 %1782
        %1784 = vmax.xlane.f32.xlu0 %v1761
        %v1785 = vpop.xlane.xlu0 %1784
        %1786 = vmax.xlane.f32.xlu0 %v1762
        %v1787 = vpop.xlane.xlu0 %1786
        %1788 = vmax.xlane.f32.xlu0 %v1763
        %v1789 = vpop.xlane.xlu0 %1788
        %1790 = vmax.xlane.f32.xlu0 %v1764
        %v1791 = vpop.xlane.xlu0 %1790
        %1792 = vmax.xlane.f32.xlu0 %v1765
        %v1793 = vpop.xlane.xlu0 %1792
        %1794 = vmax.xlane.f32.xlu0 %v1766
        %v1795 = vpop.xlane.xlu0 %1794
        %1796 = vmax.xlane.f32.xlu0 %v1767
        %v1797 = vpop.xlane.xlu0 %1796
        %1798 = vmax.xlane.f32.xlu0 %v1768
        %v1799 = vpop.xlane.xlu0 %1798
        %1800 = vmax.xlane.f32.xlu0 %v1769
        %v1801 = vpop.xlane.xlu0 %1800
        %v1802 = vlaneseq
        %v1803 = vshrl.u32 %v1802, 7
        %v1804 = vsub.s32 1, %v1803
        %v1805 = vrot.slane %v1748, %v1804
        %vm1806 = vcmp.eq.s32.totalorder %v1805, 1
        %v1807 = vsel %vm1806, %v1674, -1e+30
        %v1808 = vsel %vm1806, %v1677, -1e+30
        %v1809 = vsel %vm1806, %v1682, -1e+30
        %v1810 = vsel %vm1806, %v1685, -1e+30
        %v1811 = vsel %vm1806, %v1690, -1e+30
        %v1812 = vsel %vm1806, %v1693, -1e+30
        %v1813 = vsel %vm1806, %v1698, -1e+30
        %v1814 = vsel %vm1806, %v1701, -1e+30
        %v1815 = vsel %vm1806, %v1706, -1e+30
        %v1816 = vsel %vm1806, %v1709, -1e+30
        %v1817 = vsel %vm1806, %v1714, -1e+30
        %v1818 = vsel %vm1806, %v1717, -1e+30
        %v1819 = vsel %vm1806, %v1722, -1e+30
        %v1820 = vsel %vm1806, %v1725, -1e+30
        %v1821 = vsel %vm1806, %v1730, -1e+30
        %v1822 = vsel %vm1806, %v1733, -1e+30
        %1823 = vmax.xlane.f32.xlu0 %v1807
        %v1824 = vpop.xlane.xlu0 %1823
        %1825 = vmax.xlane.f32.xlu0 %v1808
        %v1826 = vpop.xlane.xlu0 %1825
        %1827 = vmax.xlane.f32.xlu0 %v1809
        %v1828 = vpop.xlane.xlu0 %1827
        %1829 = vmax.xlane.f32.xlu0 %v1810
        %v1830 = vpop.xlane.xlu0 %1829
        %1831 = vmax.xlane.f32.xlu0 %v1811
        %v1832 = vpop.xlane.xlu0 %1831
        %1833 = vmax.xlane.f32.xlu0 %v1812
        %v1834 = vpop.xlane.xlu0 %1833
        %1835 = vmax.xlane.f32.xlu0 %v1813
        %v1836 = vpop.xlane.xlu0 %1835
        %1837 = vmax.xlane.f32.xlu0 %v1814
        %v1838 = vpop.xlane.xlu0 %1837
        %1839 = vmax.xlane.f32.xlu0 %v1815
        %v1840 = vpop.xlane.xlu0 %1839
        %1841 = vmax.xlane.f32.xlu0 %v1816
        %v1842 = vpop.xlane.xlu0 %1841
        %1843 = vmax.xlane.f32.xlu0 %v1817
        %v1844 = vpop.xlane.xlu0 %1843
        %1845 = vmax.xlane.f32.xlu0 %v1818
        %v1846 = vpop.xlane.xlu0 %1845
        %1847 = vmax.xlane.f32.xlu0 %v1819
        %v1848 = vpop.xlane.xlu0 %1847
        %1849 = vmax.xlane.f32.xlu0 %v1820
        %v1850 = vpop.xlane.xlu0 %1849
        %1851 = vmax.xlane.f32.xlu0 %v1821
        %v1852 = vpop.xlane.xlu0 %1851
        %1853 = vmax.xlane.f32.xlu0 %v1822
        %v1854 = vpop.xlane.xlu0 %1853
        %v1855 = vlaneseq
        %v1856 = vshrl.u32 %v1855, 7
        %v1857 = vsub.s32 2, %v1856
        %v1858 = vrot.slane %v1748, %v1857
        %vm1859 = vcmp.eq.s32.totalorder %v1858, 1
        %v1860 = vsel %vm1859, %v1674, -1e+30
        %v1861 = vsel %vm1859, %v1677, -1e+30
        %v1862 = vsel %vm1859, %v1682, -1e+30
        %v1863 = vsel %vm1859, %v1685, -1e+30
        %v1864 = vsel %vm1859, %v1690, -1e+30
        %v1865 = vsel %vm1859, %v1693, -1e+30
        %v1866 = vsel %vm1859, %v1698, -1e+30
        %v1867 = vsel %vm1859, %v1701, -1e+30
        %v1868 = vsel %vm1859, %v1706, -1e+30
        %v1869 = vsel %vm1859, %v1709, -1e+30
        %v1870 = vsel %vm1859, %v1714, -1e+30
        %v1871 = vsel %vm1859, %v1717, -1e+30
        %v1872 = vsel %vm1859, %v1722, -1e+30
        %v1873 = vsel %vm1859, %v1725, -1e+30
        %v1874 = vsel %vm1859, %v1730, -1e+30
        %v1875 = vsel %vm1859, %v1733, -1e+30
        %1876 = vmax.xlane.f32.xlu0 %v1860
        %v1877 = vpop.xlane.xlu0 %1876
        %1878 = vmax.xlane.f32.xlu0 %v1861
        %v1879 = vpop.xlane.xlu0 %1878
        %1880 = vmax.xlane.f32.xlu0 %v1862
        %v1881 = vpop.xlane.xlu0 %1880
        %1882 = vmax.xlane.f32.xlu0 %v1863
        %v1883 = vpop.xlane.xlu0 %1882
        %1884 = vmax.xlane.f32.xlu0 %v1864
        %v1885 = vpop.xlane.xlu0 %1884
        %1886 = vmax.xlane.f32.xlu0 %v1865
        %v1887 = vpop.xlane.xlu0 %1886
        %1888 = vmax.xlane.f32.xlu0 %v1866
        %v1889 = vpop.xlane.xlu0 %1888
        %1890 = vmax.xlane.f32.xlu0 %v1867
        %v1891 = vpop.xlane.xlu0 %1890
        %1892 = vmax.xlane.f32.xlu0 %v1868
        %v1893 = vpop.xlane.xlu0 %1892
        %1894 = vmax.xlane.f32.xlu0 %v1869
        %v1895 = vpop.xlane.xlu0 %1894
        %1896 = vmax.xlane.f32.xlu0 %v1870
        %v1897 = vpop.xlane.xlu0 %1896
        %1898 = vmax.xlane.f32.xlu0 %v1871
        %v1899 = vpop.xlane.xlu0 %1898
        %1900 = vmax.xlane.f32.xlu0 %v1872
        %v1901 = vpop.xlane.xlu0 %1900
        %1902 = vmax.xlane.f32.xlu0 %v1873
        %v1903 = vpop.xlane.xlu0 %1902
        %1904 = vmax.xlane.f32.xlu0 %v1874
        %v1905 = vpop.xlane.xlu0 %1904
        %1906 = vmax.xlane.f32.xlu0 %v1875
        %v1907 = vpop.xlane.xlu0 %1906
        %vm1908 = vcmask 7168
        %v1909 = vsel %vm1908, %v1771, %v1824
        %v1910 = vsel %vm1908, %v1773, %v1826
        %v1911 = vsel %vm1908, %v1775, %v1828
        %v1912 = vsel %vm1908, %v1777, %v1830
        %v1913 = vsel %vm1908, %v1779, %v1832
        %v1914 = vsel %vm1908, %v1781, %v1834
        %v1915 = vsel %vm1908, %v1783, %v1836
        %v1916 = vsel %vm1908, %v1785, %v1838
        %v1917 = vsel %vm1908, %v1787, %v1840
        %v1918 = vsel %vm1908, %v1789, %v1842
        %v1919 = vsel %vm1908, %v1791, %v1844
        %v1920 = vsel %vm1908, %v1793, %v1846
        %v1921 = vsel %vm1908, %v1795, %v1848
        %v1922 = vsel %vm1908, %v1797, %v1850
        %v1923 = vsel %vm1908, %v1799, %v1852
        %v1924 = vsel %vm1908, %v1801, %v1854
        %vm1925 = vcmask 15360
        %v1926 = vsel %vm1925, %v1909, %v1877
        %v1927 = vsel %vm1925, %v1910, %v1879
        %v1928 = vsel %vm1925, %v1911, %v1881
        %v1929 = vsel %vm1925, %v1912, %v1883
        %v1930 = vsel %vm1925, %v1913, %v1885
        %v1931 = vsel %vm1925, %v1914, %v1887
        %v1932 = vsel %vm1925, %v1915, %v1889
        %v1933 = vsel %vm1925, %v1916, %v1891
        %v1934 = vsel %vm1925, %v1917, %v1893
        %v1935 = vsel %vm1925, %v1918, %v1895
        %v1936 = vsel %vm1925, %v1919, %v1897
        %v1937 = vsel %vm1925, %v1920, %v1899
        %v1938 = vsel %vm1925, %v1921, %v1901
        %v1939 = vsel %vm1925, %v1922, %v1903
        %v1940 = vsel %vm1925, %v1923, %v1905
        %v1941 = vsel %vm1925, %v1924, %v1907
        %v1942 = vpack.c.bf16 %v1927, %v1926
        %v1943 = vpack.c.bf16 %v1929, %v1928
        %v1944 = vpack.c.bf16 %v1931, %v1930
        %v1945 = vpack.c.bf16 %v1933, %v1932
        %v1946 = vpack.c.bf16 %v1935, %v1934
        %v1947 = vpack.c.bf16 %v1937, %v1936
        %v1948 = vpack.c.bf16 %v1939, %v1938
        %v1949 = vpack.c.bf16 %v1941, %v1940
        %vm1950 = vcmask 23552
        %v1952 = vsel %vm1950, %v1942, 0
        %v1955 = vsel %vm1950, %v1943, 0
        %v1958 = vsel %vm1950, %v1944, 0
        %v1961 = vsel %vm1950, %v1945, 0
        %v1964 = vsel %vm1950, %v1946, 0
        %v1967 = vsel %vm1950, %v1947, 0
        %v1970 = vsel %vm1950, %v1948, 0
        %v1973 = vsel %vm1950, %v1949, 0
        %vm1975 = vcmask 1040384
        %vm1976 = vcmask 1041408
        %v1977 = vsel %vm1975, 4294967295, 65535
        %v1978 = vsel %vm1976, %v1977, 0
        %v1980 = vand.u32 %v1737, %v1978
        %1982 = vmatprep.subr.bf16.mxu0 0
        %1983 = vmatpush1.bf16.msra.mxu0 %v1980
        %1984 = vmatprep.subr.bf16.mxu0 0
        %1985 = vmatpush1.bf16.msra.mxu0 0
        %1986 = vmatprep.subr.bf16.mxu0 0
        %1987 = vmatpush1.bf16.msra.mxu0 0
        %1988 = vmatprep.subr.bf16.mxu0 0
        %1989 = vmatpush1.bf16.msra.mxu0 0
        %1990 = vmatprep.subr.bf16.mxu0 0
        %1991 = vmatpush1.bf16.msra.mxu0 0
        %1992 = vmatprep.subr.bf16.mxu0 0
        %1993 = vmatpush1.bf16.msra.mxu0 0
        %1994 = vmatprep.subr.bf16.mxu0 0
        %1995 = vmatpush1.bf16.msra.mxu0 0
        %1996 = vmatprep.subr.bf16.mxu0 0
        %1997 = vmatpush1.bf16.msra.mxu0 0
        %1998 = vmatprep.subr.bf16.mxu0 0
        %1999 = vmatpush1.bf16.msra.mxu0 0
        %2000 = vmatprep.subr.bf16.mxu0 0
        %2001 = vmatpush1.bf16.msra.mxu0 0
        %2002 = vmatprep.subr.bf16.mxu0 0
        %2003 = vmatpush1.bf16.msra.mxu0 0
        %2004 = vmatprep.subr.bf16.mxu0 0
        %2005 = vmatpush1.bf16.msra.mxu0 0
        %2006 = vmatprep.subr.bf16.mxu0 0
        %2007 = vmatpush1.bf16.msra.mxu0 0
        %2008 = vmatprep.subr.bf16.mxu0 0
        %2009 = vmatpush1.bf16.msra.mxu0 0
        %2010 = vmatprep.subr.bf16.mxu0 0
        %2011 = vmatpush1.bf16.msra.mxu0 0
        %2012 = vmatprep.subr.bf16.mxu0 0
        %2013 = vmatpush1.bf16.msra.mxu0 0
        %2014 = vmatprep.mubr.bf16.mxu0 0
        %2015 = vmatmul.mubr.bf16.gmra.mrb[0].mxu0 %v1952
        %v2016 = vpop.f32.mrb[0].mxu0
        %v2017 = vadd.f32 0.0, %v2016
        %v2018 = vpop.f32.mrb[0].mxu0
        %v2019 = vpop.f32.mrb[0].mxu0
        %v2020 = vadd.f32 0.0, %v2019
        %v2021 = vpop.f32.mrb[0].mxu0
        %2022 = vmatprep.mubr.bf16.mxu0 0
        %2023 = vmatmul.mubr.bf16.gmra.mrb[0].mxu0 %v1955
        %v2024 = vpop.f32.mrb[0].mxu0
        %v2025 = vadd.f32 0.0, %v2024
        %v2026 = vpop.f32.mrb[0].mxu0
        %v2027 = vpop.f32.mrb[0].mxu0
        %v2028 = vadd.f32 0.0, %v2027
        %v2029 = vpop.f32.mrb[0].mxu0
        %2030 = vmatprep.mubr.bf16.mxu0 0
        %2031 = vmatmul.mubr.bf16.gmra.mrb[0].mxu0 %v1958
        %v2032 = vpop.f32.mrb[0].mxu0
        %v2033 = vadd.f32 0.0, %v2032
        %v2034 = vpop.f32.mrb[0].mxu0
        %v2035 = vpop.f32.mrb[0].mxu0
        %v2036 = vadd.f32 0.0, %v2035
        %v2037 = vpop.f32.mrb[0].mxu0
        %2038 = vmatprep.mubr.bf16.mxu0 0
        %2039 = vmatmul.mubr.bf16.gmra.mrb[0].mxu0 %v1961
        %v2040 = vpop.f32.mrb[0].mxu0
        %v2041 = vadd.f32 0.0, %v2040
        %v2042 = vpop.f32.mrb[0].mxu0
        %v2043 = vpop.f32.mrb[0].mxu0
        %v2044 = vadd.f32 0.0, %v2043
        %v2045 = vpop.f32.mrb[0].mxu0
        %2046 = vmatprep.mubr.bf16.mxu0 0
        %2047 = vmatmul.mubr.bf16.gmra.mrb[0].mxu0 %v1964
        %v2048 = vpop.f32.mrb[0].mxu0
        %v2049 = vadd.f32 0.0, %v2048
        %v2050 = vpop.f32.mrb[0].mxu0
        %v2051 = vpop.f32.mrb[0].mxu0
        %v2052 = vadd.f32 0.0, %v2051
        %v2053 = vpop.f32.mrb[0].mxu0
        %2054 = vmatprep.mubr.bf16.mxu0 0
        %2055 = vmatmul.mubr.bf16.gmra.mrb[0].mxu0 %v1967
        %v2056 = vpop.f32.mrb[0].mxu0
        %v2057 = vadd.f32 0.0, %v2056
        %v2058 = vpop.f32.mrb[0].mxu0
        %v2059 = vpop.f32.mrb[0].mxu0
        %v2060 = vadd.f32 0.0, %v2059
        %v2061 = vpop.f32.mrb[0].mxu0
        %2062 = vmatprep.mubr.bf16.mxu0 0
        %2063 = vmatmul.mubr.bf16.gmra.mrb[0].mxu0 %v1970
        %v2064 = vpop.f32.mrb[0].mxu0
        %v2065 = vadd.f32 0.0, %v2064
        %v2066 = vpop.f32.mrb[0].mxu0
        %v2067 = vpop.f32.mrb[0].mxu0
        %v2068 = vadd.f32 0.0, %v2067
        %v2069 = vpop.f32.mrb[0].mxu0
        %2070 = vmatprep.mubr.bf16.mxu0 0
        %2071 = vmatmul.mubr.bf16.gmra.mrb[0].mxu0 %v1973
        %v2072 = vpop.f32.mrb[0].mxu0
        %v2073 = vadd.f32 0.0, %v2072
        %v2074 = vpop.f32.mrb[0].mxu0
        %v2075 = vpop.f32.mrb[0].mxu0
        %v2076 = vadd.f32 0.0, %v2075
        %v2077 = vpop.f32.mrb[0].mxu0
        %2078 = vdwg.mxu0
        %v2079 = vsub.f32 %v1674, %v2017
        %v2080 = vsub.f32 %v1677, %v2020
        %v2081 = vsub.f32 %v1682, %v2025
        %v2082 = vsub.f32 %v1685, %v2028
        %v2083 = vsub.f32 %v1690, %v2033
        %v2084 = vsub.f32 %v1693, %v2036
        %v2085 = vsub.f32 %v1698, %v2041
        %v2086 = vsub.f32 %v1701, %v2044
        %v2087 = vsub.f32 %v1706, %v2049
        %v2088 = vsub.f32 %v1709, %v2052
        %v2089 = vsub.f32 %v1714, %v2057
        %v2090 = vsub.f32 %v1717, %v2060
        %v2091 = vsub.f32 %v1722, %v2065
        %v2092 = vsub.f32 %v1725, %v2068
        %v2093 = vsub.f32 %v1730, %v2073
        %v2094 = vsub.f32 %v1733, %v2076
        %v2095 = vsel %vm1746, 1, 0
        %vm2096 = vcmp.eq.s32.totalorder %v2095, 1
        %v2097 = vsel %vm2096, %v2079, -1e+30
        %v2098 = vsel %vm2096, %v2080, -1e+30
        %v2099 = vsel %vm2096, %v2081, -1e+30
        %v2100 = vsel %vm2096, %v2082, -1e+30
        %v2101 = vsel %vm2096, %v2083, -1e+30
        %v2102 = vsel %vm2096, %v2084, -1e+30
        %v2103 = vsel %vm2096, %v2085, -1e+30
        %v2104 = vsel %vm2096, %v2086, -1e+30
        %v2105 = vsel %vm2096, %v2087, -1e+30
        %v2106 = vsel %vm2096, %v2088, -1e+30
        %v2107 = vsel %vm2096, %v2089, -1e+30
        %v2108 = vsel %vm2096, %v2090, -1e+30
        %v2109 = vsel %vm2096, %v2091, -1e+30
        %v2110 = vsel %vm2096, %v2092, -1e+30
        %v2111 = vsel %vm2096, %v2093, -1e+30
        %v2112 = vsel %vm2096, %v2094, -1e+30
        %v2113 = vmul.f32 %v2097, 1.442695
        %v2114 = vpow.pop %v2113
        %v2115 = vmul.f32 %v2098, 1.442695
        %v2116 = vpow.pop %v2115
        %v2117 = vmul.f32 %v2099, 1.442695
        %v2118 = vpow.pop %v2117
        %v2119 = vmul.f32 %v2100, 1.442695
        %v2120 = vpow.pop %v2119
        %v2121 = vmul.f32 %v2101, 1.442695
        %v2122 = vpow.pop %v2121
        %v2123 = vmul.f32 %v2102, 1.442695
        %v2124 = vpow.pop %v2123
        %v2125 = vmul.f32 %v2103, 1.442695
        %v2126 = vpow.pop %v2125
        %v2127 = vmul.f32 %v2104, 1.442695
        %v2128 = vpow.pop %v2127
        %v2129 = vmul.f32 %v2105, 1.442695
        %v2130 = vpow.pop %v2129
        %v2131 = vmul.f32 %v2106, 1.442695
        %v2132 = vpow.pop %v2131
        %v2133 = vmul.f32 %v2107, 1.442695
        %v2134 = vpow.pop %v2133
        %v2135 = vmul.f32 %v2108, 1.442695
        %v2136 = vpow.pop %v2135
        %v2137 = vmul.f32 %v2109, 1.442695
        %v2138 = vpow.pop %v2137
        %v2139 = vmul.f32 %v2110, 1.442695
        %v2140 = vpow.pop %v2139
        %v2141 = vmul.f32 %v2111, 1.442695
        %v2142 = vpow.pop %v2141
        %v2143 = vmul.f32 %v2112, 1.442695
        %v2144 = vpow.pop %v2143
        %v2145 = vpack.c.bf16 %v2116, %v2114
        %v2146 = vpack.c.bf16 %v2120, %v2118
        %v2147 = vpack.c.bf16 %v2124, %v2122
        %v2148 = vpack.c.bf16 %v2128, %v2126
        %v2149 = vpack.c.bf16 %v2132, %v2130
        %v2150 = vpack.c.bf16 %v2136, %v2134
        %v2151 = vpack.c.bf16 %v2140, %v2138
        %v2152 = vpack.c.bf16 %v2144, %v2142
        %2153 = vmatprep.subr.bf16.mxu0 0
        %2154 = vmatpush1.bf16.xpose.msra.mxu0 %v1737
        %2155 = vmatprep.subr.bf16.mxu0 0
        %2156 = vmatpush1.bf16.xpose.msra.mxu0 0
        %2157 = vmatprep.subr.bf16.mxu0 0
        %2158 = vmatpush1.bf16.xpose.msra.mxu0 0
        %2159 = vmatprep.subr.bf16.mxu0 0
        %2160 = vmatpush1.bf16.xpose.msra.mxu0 0
        %2161 = vmatprep.subr.bf16.mxu0 0
        %2162 = vmatpush1.bf16.xpose.msra.mxu0 0
        %2163 = vmatprep.subr.bf16.mxu0 0
        %2164 = vmatpush1.bf16.xpose.msra.mxu0 0
        %2165 = vmatprep.subr.bf16.mxu0 0
        %2166 = vmatpush1.bf16.xpose.msra.mxu0 0
        %2167 = vmatprep.subr.bf16.mxu0 0
        %2168 = vmatpush1.bf16.xpose.msra.mxu0 0
        %2169 = vmatprep.subr.bf16.mxu0 0
        %2170 = vmatpush1.bf16.xpose.msra.mxu0 0
        %2171 = vmatprep.subr.bf16.mxu0 0
        %2172 = vmatpush1.bf16.xpose.msra.mxu0 0
        %2173 = vmatprep.subr.bf16.mxu0 0
        %2174 = vmatpush1.bf16.xpose.msra.mxu0 0
        %2175 = vmatprep.subr.bf16.mxu0 0
        %2176 = vmatpush1.bf16.xpose.msra.mxu0 0
        %2177 = vmatprep.subr.bf16.mxu0 0
        %2178 = vmatpush1.bf16.xpose.msra.mxu0 0
        %2179 = vmatprep.subr.bf16.mxu0 0
        %2180 = vmatpush1.bf16.xpose.msra.mxu0 0
        %2181 = vmatprep.subr.bf16.mxu0 0
        %2182 = vmatpush1.bf16.xpose.msra.mxu0 0
        %2183 = vmatprep.subr.bf16.mxu0 0
        %2184 = vmatpush1.bf16.xpose.msra.mxu0 0
        %2185 = vmatprep.mubr.bf16.mxu0 0
        %2186 = vmatmul.mubr.bf16.gmra.mrb[0].mxu0 %v2145
        %v2187 = vpop.f32.mrb[0].mxu0
        %v2188 = vadd.f32 0.0, %v2187
        %v2189 = vpop.f32.mrb[0].mxu0
        %v2190 = vpop.f32.mrb[0].mxu0
        %v2191 = vadd.f32 0.0, %v2190
        %v2192 = vpop.f32.mrb[0].mxu0
        %2193 = vmatprep.mubr.bf16.mxu0 0
        %2194 = vmatmul.mubr.bf16.gmra.mrb[0].mxu0 %v2146
        %v2195 = vpop.f32.mrb[0].mxu0
        %v2196 = vadd.f32 0.0, %v2195
        %v2197 = vpop.f32.mrb[0].mxu0
        %v2198 = vpop.f32.mrb[0].mxu0
        %v2199 = vadd.f32 0.0, %v2198
        %v2200 = vpop.f32.mrb[0].mxu0
        %2201 = vmatprep.mubr.bf16.mxu0 0
        %2202 = vmatmul.mubr.bf16.gmra.mrb[0].mxu0 %v2147
        %v2203 = vpop.f32.mrb[0].mxu0
        %v2204 = vadd.f32 0.0, %v2203
        %v2205 = vpop.f32.mrb[0].mxu0
        %v2206 = vpop.f32.mrb[0].mxu0
        %v2207 = vadd.f32 0.0, %v2206
        %v2208 = vpop.f32.mrb[0].mxu0
        %2209 = vmatprep.mubr.bf16.mxu0 0
        %2210 = vmatmul.mubr.bf16.gmra.mrb[0].mxu0 %v2148
        %v2211 = vpop.f32.mrb[0].mxu0
        %v2212 = vadd.f32 0.0, %v2211
        %v2213 = vpop.f32.mrb[0].mxu0
        %v2214 = vpop.f32.mrb[0].mxu0
        %v2215 = vadd.f32 0.0, %v2214
        %v2216 = vpop.f32.mrb[0].mxu0
        %2217 = vmatprep.mubr.bf16.mxu0 0
        %2218 = vmatmul.mubr.bf16.gmra.mrb[0].mxu0 %v2149
        %v2219 = vpop.f32.mrb[0].mxu0
        %v2220 = vadd.f32 0.0, %v2219
        %v2221 = vpop.f32.mrb[0].mxu0
        %v2222 = vpop.f32.mrb[0].mxu0
        %v2223 = vadd.f32 0.0, %v2222
        %v2224 = vpop.f32.mrb[0].mxu0
        %2225 = vmatprep.mubr.bf16.mxu0 0
        %2226 = vmatmul.mubr.bf16.gmra.mrb[0].mxu0 %v2150
        %v2227 = vpop.f32.mrb[0].mxu0
        %v2228 = vadd.f32 0.0, %v2227
        %v2229 = vpop.f32.mrb[0].mxu0
        %v2230 = vpop.f32.mrb[0].mxu0
        %v2231 = vadd.f32 0.0, %v2230
        %v2232 = vpop.f32.mrb[0].mxu0
        %2233 = vmatprep.mubr.bf16.mxu0 0
        %2234 = vmatmul.mubr.bf16.gmra.mrb[0].mxu0 %v2151
        %v2235 = vpop.f32.mrb[0].mxu0
        %v2236 = vadd.f32 0.0, %v2235
        %v2237 = vpop.f32.mrb[0].mxu0
        %v2238 = vpop.f32.mrb[0].mxu0
        %v2239 = vadd.f32 0.0, %v2238
        %v2240 = vpop.f32.mrb[0].mxu0
        %2241 = vmatprep.mubr.bf16.mxu0 0
        %2242 = vmatmul.mubr.bf16.gmra.mrb[0].mxu0 %v2152
        %v2243 = vpop.f32.mrb[0].mxu0
        %v2244 = vadd.f32 0.0, %v2243
        %v2245 = vpop.f32.mrb[0].mxu0
        %v2246 = vpop.f32.mrb[0].mxu0
        %v2247 = vadd.f32 0.0, %v2246
        %v2248 = vpop.f32.mrb[0].mxu0
        %2249 = vdwg.mxu0
        %v2250 = vpack.c.bf16 %v2191, %v2188
        %v2251 = vpack.c.bf16 %v2199, %v2196
        %v2252 = vpack.c.bf16 %v2207, %v2204
        %v2253 = vpack.c.bf16 %v2215, %v2212
        %v2254 = vpack.c.bf16 %v2223, %v2220
        %v2255 = vpack.c.bf16 %v2231, %v2228
        %v2256 = vpack.c.bf16 %v2239, %v2236
        %v2257 = vpack.c.bf16 %v2247, %v2244
        %v2258 = vsub.f32 1.0, %v1745
        %v2260 = vsel %vm1950, %v2250, 0
        %v2263 = vsel %vm1950, %v2251, 0
        %v2266 = vsel %vm1950, %v2252, 0
        %v2269 = vsel %vm1950, %v2253, 0
        %v2272 = vsel %vm1950, %v2254, 0
        %v2275 = vsel %vm1950, %v2255, 0
        %v2278 = vsel %vm1950, %v2256, 0
        %v2281 = vsel %vm1950, %v2257, 0
        %2283 = vmatprep.subr.bf16.mxu0 0
        %2284 = vmatpush1.bf16.msra.mxu0 %v1980
        %2285 = vmatprep.subr.bf16.mxu0 0
        %2286 = vmatpush1.bf16.msra.mxu0 0
        %2287 = vmatprep.subr.bf16.mxu0 0
        %2288 = vmatpush1.bf16.msra.mxu0 0
        %2289 = vmatprep.subr.bf16.mxu0 0
        %2290 = vmatpush1.bf16.msra.mxu0 0
        %2291 = vmatprep.subr.bf16.mxu0 0
        %2292 = vmatpush1.bf16.msra.mxu0 0
        %2293 = vmatprep.subr.bf16.mxu0 0
        %2294 = vmatpush1.bf16.msra.mxu0 0
        %2295 = vmatprep.subr.bf16.mxu0 0
        %2296 = vmatpush1.bf16.msra.mxu0 0
        %2297 = vmatprep.subr.bf16.mxu0 0
        %2298 = vmatpush1.bf16.msra.mxu0 0
        %2299 = vmatprep.subr.bf16.mxu0 0
        %2300 = vmatpush1.bf16.msra.mxu0 0
        %2301 = vmatprep.subr.bf16.mxu0 0
        %2302 = vmatpush1.bf16.msra.mxu0 0
        %2303 = vmatprep.subr.bf16.mxu0 0
        %2304 = vmatpush1.bf16.msra.mxu0 0
        %2305 = vmatprep.subr.bf16.mxu0 0
        %2306 = vmatpush1.bf16.msra.mxu0 0
        %2307 = vmatprep.subr.bf16.mxu0 0
        %2308 = vmatpush1.bf16.msra.mxu0 0
        %2309 = vmatprep.subr.bf16.mxu0 0
        %2310 = vmatpush1.bf16.msra.mxu0 0
        %2311 = vmatprep.subr.bf16.mxu0 0
        %2312 = vmatpush1.bf16.msra.mxu0 0
        %2313 = vmatprep.subr.bf16.mxu0 0
        %2314 = vmatpush1.bf16.msra.mxu0 0
        %2315 = vmatprep.mubr.bf16.mxu0 0
        %2316 = vmatmul.mubr.bf16.gmra.mrb[0].mxu0 %v2260
        %v2317 = vpop.f32.mrb[0].mxu0
        %v2318 = vadd.f32 %v2258, %v2317
        %v2319 = vpop.f32.mrb[0].mxu0
        %v2320 = vpop.f32.mrb[0].mxu0
        %v2321 = vadd.f32 %v2258, %v2320
        %v2322 = vpop.f32.mrb[0].mxu0
        %2323 = vmatprep.mubr.bf16.mxu0 0
        %2324 = vmatmul.mubr.bf16.gmra.mrb[0].mxu0 %v2263
        %v2325 = vpop.f32.mrb[0].mxu0
        %v2326 = vadd.f32 %v2258, %v2325
        %v2327 = vpop.f32.mrb[0].mxu0
        %v2328 = vpop.f32.mrb[0].mxu0
        %v2329 = vadd.f32 %v2258, %v2328
        %v2330 = vpop.f32.mrb[0].mxu0
        %2331 = vmatprep.mubr.bf16.mxu0 0
        %2332 = vmatmul.mubr.bf16.gmra.mrb[0].mxu0 %v2266
        %v2333 = vpop.f32.mrb[0].mxu0
        %v2334 = vadd.f32 %v2258, %v2333
        %v2335 = vpop.f32.mrb[0].mxu0
        %v2336 = vpop.f32.mrb[0].mxu0
        %v2337 = vadd.f32 %v2258, %v2336
        %v2338 = vpop.f32.mrb[0].mxu0
        %2339 = vmatprep.mubr.bf16.mxu0 0
        %2340 = vmatmul.mubr.bf16.gmra.mrb[0].mxu0 %v2269
        %v2341 = vpop.f32.mrb[0].mxu0
        %v2342 = vadd.f32 %v2258, %v2341
        %v2343 = vpop.f32.mrb[0].mxu0
        %v2344 = vpop.f32.mrb[0].mxu0
        %v2345 = vadd.f32 %v2258, %v2344
        %v2346 = vpop.f32.mrb[0].mxu0
        %2347 = vmatprep.mubr.bf16.mxu0 0
        %2348 = vmatmul.mubr.bf16.gmra.mrb[0].mxu0 %v2272
        %v2349 = vpop.f32.mrb[0].mxu0
        %v2350 = vadd.f32 %v2258, %v2349
        %v2351 = vpop.f32.mrb[0].mxu0
        %v2352 = vpop.f32.mrb[0].mxu0
        %v2353 = vadd.f32 %v2258, %v2352
        %v2354 = vpop.f32.mrb[0].mxu0
        %2355 = vmatprep.mubr.bf16.mxu0 0
        %2356 = vmatmul.mubr.bf16.gmra.mrb[0].mxu0 %v2275
        %v2357 = vpop.f32.mrb[0].mxu0
        %v2358 = vadd.f32 %v2258, %v2357
        %v2359 = vpop.f32.mrb[0].mxu0
        %v2360 = vpop.f32.mrb[0].mxu0
        %v2361 = vadd.f32 %v2258, %v2360
        %v2362 = vpop.f32.mrb[0].mxu0
        %2363 = vmatprep.mubr.bf16.mxu0 0
        %2364 = vmatmul.mubr.bf16.gmra.mrb[0].mxu0 %v2278
        %v2365 = vpop.f32.mrb[0].mxu0
        %v2366 = vadd.f32 %v2258, %v2365
        %v2367 = vpop.f32.mrb[0].mxu0
        %v2368 = vpop.f32.mrb[0].mxu0
        %v2369 = vadd.f32 %v2258, %v2368
        %v2370 = vpop.f32.mrb[0].mxu0
        %2371 = vmatprep.mubr.bf16.mxu0 0
        %2372 = vmatmul.mubr.bf16.gmra.mrb[0].mxu0 %v2281
        %v2373 = vpop.f32.mrb[0].mxu0
        %v2374 = vadd.f32 %v2258, %v2373
        %v2375 = vpop.f32.mrb[0].mxu0
        %v2376 = vpop.f32.mrb[0].mxu0
        %v2377 = vadd.f32 %v2258, %v2376
        %v2378 = vpop.f32.mrb[0].mxu0
        %2379 = vdwg.mxu0
        %v2380 = vrcp.pop %v2318
        %v2381 = vrcp.pop %v2321
        %v2382 = vrcp.pop %v2326
        %v2383 = vrcp.pop %v2329
        %v2384 = vrcp.pop %v2334
        %v2385 = vrcp.pop %v2337
        %v2386 = vrcp.pop %v2342
        %v2387 = vrcp.pop %v2345
        %v2388 = vrcp.pop %v2350
        %v2389 = vrcp.pop %v2353
        %v2390 = vrcp.pop %v2358
        %v2391 = vrcp.pop %v2361
        %v2392 = vrcp.pop %v2366
        %v2393 = vrcp.pop %v2369
        %v2394 = vrcp.pop %v2374
        %v2395 = vrcp.pop %v2377
        %v2396 = vmul.f32 %v2114, %v2380
        %v2397 = vmul.f32 %v2116, %v2381
        %v2398 = vmul.f32 %v2118, %v2382
        %v2399 = vmul.f32 %v2120, %v2383
        %v2400 = vmul.f32 %v2122, %v2384
        %v2401 = vmul.f32 %v2124, %v2385
        %v2402 = vmul.f32 %v2126, %v2386
        %v2403 = vmul.f32 %v2128, %v2387
        %v2404 = vmul.f32 %v2130, %v2388
        %v2405 = vmul.f32 %v2132, %v2389
        %v2406 = vmul.f32 %v2134, %v2390
        %v2407 = vmul.f32 %v2136, %v2391
        %v2408 = vmul.f32 %v2138, %v2392
        %v2409 = vmul.f32 %v2140, %v2393
        %v2410 = vmul.f32 %v2142, %v2394
        %v2411 = vmul.f32 %v2144, %v2395
        %v2412 = vsel %vm2096, %v2396, %v1674
        %v2413 = vsel %vm2096, %v2397, %v1677
        %v2414 = vsel %vm2096, %v2398, %v1682
        %v2415 = vsel %vm2096, %v2399, %v1685
        %v2416 = vsel %vm2096, %v2400, %v1690
        %v2417 = vsel %vm2096, %v2401, %v1693
        %v2418 = vsel %vm2096, %v2402, %v1698
        %v2419 = vsel %vm2096, %v2403, %v1701
        %v2420 = vsel %vm2096, %v2404, %v1706
        %v2421 = vsel %vm2096, %v2405, %v1709
        %v2422 = vsel %vm2096, %v2406, %v1714
        %v2423 = vsel %vm2096, %v2407, %v1717
        %v2424 = vsel %vm2096, %v2408, %v1722
        %v2425 = vsel %vm2096, %v2409, %v1725
        %v2426 = vsel %vm2096, %v2410, %v1730
        %v2427 = vsel %vm2096, %v2411, %v1733
        %2428 = vst [vmem:[%s407] sm:$0xff] %v2412
        %2429 = vst [vmem:[%s407 + $0x8] sm:$0xff] %v2413
        %2430 = vst [vmem:[%s407 + $0x10] sm:$0xff] %v2414
        %2431 = vst [vmem:[%s407 + $0x18] sm:$0xff] %v2415
        %2432 = vst [vmem:[%s407 + $0x20] sm:$0xff] %v2416
        %2433 = vst [vmem:[%s407 + $0x28] sm:$0xff] %v2417
        %2434 = vst [vmem:[%s407 + $0x30] sm:$0xff] %v2418
        %2435 = vst [vmem:[%s407 + $0x38] sm:$0xff] %v2419
        %2436 = vst [vmem:[%s407 + $0x40] sm:$0xff] %v2420
        %2437 = vst [vmem:[%s407 + $0x48] sm:$0xff] %v2421
        %2438 = vst [vmem:[%s407 + $0x50] sm:$0xff] %v2422
        %2439 = vst [vmem:[%s407 + $0x58] sm:$0xff] %v2423
        %2440 = vst [vmem:[%s407 + $0x60] sm:$0xff] %v2424
        %2441 = vst [vmem:[%s407 + $0x68] sm:$0xff] %v2425
        %2442 = vst [vmem:[%s407 + $0x70] sm:$0xff] %v2426
        %2443 = vst [vmem:[%s407 + $0x78] sm:$0xff] %v2427
        %s2444 = sand.u32 %s291, 1
        %s2445 = scalar_lea.sflag [#allocation3], %s2444
        %s2446 = sand.u32 %s291, 1
        %s2447 = smul.addr %s2446, 128
        %s2448 = scalar_lea.vmem [#allocation2], %s2447
        // Predicated region
        $region69: #{tpu_custom_call.1} parent=67 // pred_check
          %p2449 = pneg %p301
        $region70: #{tpu_custom_call.1} parent=67 // pred_check_branch
          %2451 = sbr.rel (%p2449) target = $region72
        $region71: #{tpu_custom_call.1} parent=67 // pred_region
          %s2452 = smul.u32 16, %s26
          %s2454 = ssub.s32 2048, 2048
          %2455 = vsyncadd %s2445, %s2454
          %s2456 = smul.addr %s2452, 128
          %s2457 = scalar_lea.hbm %s12, %s2456
          %s2458 = sshll.u32 %s2448, 4
          %s2459 = int_to_ptr.vmem [resolvable:$true] %s2458
          %2464 = dma.vmem_to_hbm [thread:$0]  %s2459, 2048, %s2457, %s2445, 128, 128, 8
        $region72: #{tpu_custom_call.1} parent=67 // pred_fallthru
          _
      $region68: #{tpu_custom_call.1} parent=5 // pred_fallthru
        _
      %p2465 = scmp.le.s32.totalorder 2, %s21
      // Predicated region
      $region73: #{tpu_custom_call.1} parent=5 // pred_check
        %p2466 = pneg %p2465
      $region74: #{tpu_custom_call.1} parent=5 // pred_check_branch
        %2468 = sbr.rel (%p2466) target = $region76
      $region75: #{tpu_custom_call.1} parent=5 // pred_region
        %s2469 = ssub.s32 %s21, 2
        // Predicated region
        $region77: #{tpu_custom_call.1} parent=75 // pred_check
          %p2470 = pneg %p307
        $region78: #{tpu_custom_call.1} parent=75 // pred_check_branch
          %2472 = sbr.rel (%p2470) target = $region80
        $region79: #{tpu_custom_call.1} parent=75 // pred_region
          %s2473 = sand.u32 %s292, 1
          %s2474 = scalar_lea.sflag [#allocation3], %s2473
          %s2475 = sand.u32 %s292, 1
          %s2476 = smul.addr %s2475, 128
          %s2477 = scalar_lea.vmem [#allocation2], %s2476
          %2478 = dma.done %s2474, 2048
        $region80: #{tpu_custom_call.1} parent=75 // pred_fallthru
          _
      $region76: #{tpu_custom_call.1} parent=5 // pred_fallthru
        _
    $region6: #{tpu_custom_call.1} parent=1 // loop_footer
      %s25 = sadd.s32 1, %s21
    $region7: #{tpu_custom_call.1} parent=1 // loop_footer_branch
      %20 = sbr.rel target = $region3
    $region8: #{tpu_custom_call.1} parent=1 // loop_exit
      _
    %2479 = vsyncpa [#allocation3], 1
    %s2480 = scalar_lea.sflag [#allocation3], 1
    %2481 = vsyncpa %s2480, 1

</llo_original>
